<compile_context>
chip_gen: v7x
topology: tpu7x:2x2x1
jax: 0.10.0
libtpu: 0.0.40
codegen_flags: <defaults>
</compile_context>

<pallas_src>
import functools

import jax
import jax.numpy as jnp
from jax.experimental import pallas as pl
from jax.experimental.pallas import tpu as pltpu


def _round_up(v, m):
    return (v + m - 1) // m * m


def _fused_enc_dec_kernel(x_ref, mask_ref, we_ref, be_ref, wd_ref, bd_ref,
                          o_ref, enc_ref, *, wp, lp_pad, halo):
    """One image per grid step.  Flat padded-spatial axis (lp_pad) = lane dim.

    x_ref    : [1, cin_p, le]      bf16  zero-padded input (ring + lane halo + tail)
    mask_ref : [1, lp_pad]         f32   1.0 at valid (non-ring, non-tail) positions
    we_ref   : [9, cenc_p, cin_p]  bf16  encoder weights, tap-major (t = ky*3+kx)
    be_ref   : [cenc_p, 1]         f32   encoder bias
    wd_ref   : [9, cdec_p, cenc_p] bf16  decoder weights, tap-major
    bd_ref   : [cdec_p, 1]         f32   decoder bias
    o_ref    : [1, cdec_p, lp_pad] f32   decoder output (lane dense, 8 sublanes)
    enc_ref  : VMEM [cenc_p, le]   bf16  resident encoder activation (+ zero halos)
    """
    cenc_p = enc_ref.shape[0]
    # tap t = ky*3 + kx reads flat offset (ky-1)*wp + (kx-1)
    offsets = [(ky - 1) * wp + (kx - 1) for ky in range(3) for kx in range(3)]

    # ---- encoder: 9 lane-shifted bf16 dots, f32 accumulation (no im2col slab) ----
    enc_acc = None
    for t, off in enumerate(offsets):
        s = halo + off
        part = jnp.dot(we_ref[t], x_ref[0, :, s:s + lp_pad],
                       preferred_element_type=jnp.float32)
        enc_acc = part if enc_acc is None else enc_acc + part
    # bias + ReLU on the VPU in f32; the mask zeroes the pad ring and the
    # 128-alignment tail, so they act as the decoder's zero padding.
    enc = jnp.maximum(enc_acc + be_ref[...], 0.0) * mask_ref[...]

    # Keep the activation resident in VMEM as bf16 (the decoder MXU operand
    # dtype).  Only the two halo strips need zeroing; done every step (cheap)
    # so per-core scratch under megacore grid splitting is always valid.
    enc_ref[:, :halo] = jnp.zeros((cenc_p, halo), jnp.bfloat16)
    enc_ref[:, halo + lp_pad:halo + lp_pad + halo] = jnp.zeros(
        (cenc_p, halo), jnp.bfloat16)
    enc_ref[:, halo:halo + lp_pad] = enc.astype(jnp.bfloat16)

    # ---- decoder: 9 lane-shifted dots over the resident bf16 activation ----
    dec_acc = None
    for t, off in enumerate(offsets):
        s = halo + off
        part = jnp.dot(wd_ref[t], enc_ref[:, s:s + lp_pad],
                       preferred_element_type=jnp.float32)
        dec_acc = part if dec_acc is None else dec_acc + part
    o_ref[0] = (dec_acc + bd_ref[...]).astype(o_ref.dtype)


def simple_encoder_decoder_forward(x, enc_w, enc_b, dec_w, dec_b):
    """x: [N, Cin, H, W] (NCHW); weights in PyTorch OIHW layout. Returns NCHW."""
    n, cin, h, w = x.shape
    cenc = enc_w.shape[0]
    cdec = dec_w.shape[0]
    hp, wp = h + 2, w + 2
    lp = hp * wp                          # flattened padded spatial
    lp_pad = _round_up(lp, 128)           # lane-dense spatial axis
    halo = _round_up(wp + 1, 128)         # lane-aligned halo (>= max |tap offset|)
    le = lp_pad + 2 * halo

    cin_p = _round_up(cin, 8)             # sublane-align channel axes
    cenc_p = _round_up(cenc, 8)
    cdec_p = _round_up(cdec, 8)

    # ---- layout plumbing (pad / reshape only on activations; no transposes) ----
    xp = jnp.pad(x.astype(jnp.bfloat16),
                 ((0, 0), (0, cin_p - cin), (1, 1), (1, 1)))      # [N, cin_p, hp, wp]
    x_flat = jnp.pad(xp.reshape(n, cin_p, lp),
                     ((0, 0), (0, 0), (halo, halo + lp_pad - lp)))  # [N, cin_p, le]

    mask = jnp.pad(jnp.ones((h, w), jnp.float32),
                   ((1, 1), (1, 1))).reshape(1, lp)
    mask = jnp.pad(mask, ((0, 0), (0, lp_pad - lp)))              # [1, lp_pad]

    def pack_w(wgt, cout_p, cin_pad):   # OIHW -> [9, cout_p, cin_pad] bf16, tap-major
        cout, cin_w = wgt.shape[:2]
        wgt = jnp.pad(wgt, ((0, cout_p - cout), (0, cin_pad - cin_w), (0, 0), (0, 0)))
        return jnp.transpose(wgt, (2, 3, 0, 1)).reshape(
            9, cout_p, cin_pad).astype(jnp.bfloat16)

    we = pack_w(enc_w, cenc_p, cin_p)                             # [9, cenc_p, cin_p]
    wd = pack_w(dec_w, cdec_p, cenc_p)                            # [9, cdec_p, cenc_p]
    be = jnp.pad(enc_b, (0, cenc_p - cenc)).reshape(cenc_p, 1).astype(jnp.float32)
    bd = jnp.pad(dec_b, (0, cdec_p - cdec)).reshape(cdec_p, 1).astype(jnp.float32)

    kernel = functools.partial(_fused_enc_dec_kernel,
                               wp=wp, lp_pad=lp_pad, halo=halo)

    out_flat = pl.pallas_call(
        kernel,
        out_shape=jax.ShapeDtypeStruct((n, cdec_p, lp_pad), jnp.float32),
        grid=(n,),
        in_specs=[
            pl.BlockSpec((1, cin_p, le), lambda i: (i, 0, 0)),       # per-image input (bf16)
            pl.BlockSpec((1, lp_pad), lambda i: (0, 0)),             # valid mask
            pl.BlockSpec((9, cenc_p, cin_p), lambda i: (0, 0, 0)),   # encoder W
            pl.BlockSpec((cenc_p, 1), lambda i: (0, 0)),             # encoder b
            pl.BlockSpec((9, cdec_p, cenc_p), lambda i: (0, 0, 0)),  # decoder W
            pl.BlockSpec((cdec_p, 1), lambda i: (0, 0)),             # decoder b
        ],
        out_specs=pl.BlockSpec((1, cdec_p, lp_pad), lambda i: (i, 0, 0)),
        scratch_shapes=[
            pltpu.VMEM((cenc_p, le), jnp.bfloat16),                  # resident activation
        ],
        compiler_params=pltpu.CompilerParams(
            dimension_semantics=("parallel",),
            vmem_limit_bytes=32 * 1024 * 1024),
    )(x_flat, mask, we, be, wd, bd)

    # drop channel/lane padding and the pad ring: -> [N, cdec, H, W]
    out = out_flat[:, :cdec, :lp].reshape(n, cdec, hp, wp)
    return out[:, :, 1:-1, 1:-1]


class SimpleEncoderDecoder:
    """forward(x) = decoder(encoder(x)); both convs fused in one Pallas kernel."""

    def __init__(self, in_channels, enc_channels, dec_channels, key):
        k1, k2, k3, k4 = jax.random.split(key, 4)
        # encoder: Conv2d(in_channels, enc_channels, 3, padding=1) + ReLU
        self.enc_w = jax.random.normal(
            k1, (enc_channels, in_channels, 3, 3), jnp.float32) * 0.1
        self.enc_b = jax.random.normal(k2, (enc_channels,), jnp.float32) * 0.01
        self.out_channels = enc_channels  # mirrors `encoder.out_channels` wiring
        # decoder: Conv2d(encoder.out_channels, dec_channels, 3, padding=1)
        self.dec_w = jax.random.normal(
            k3, (dec_channels, self.out_channels, 3, 3), jnp.float32) * 0.1
        self.dec_b = jax.random.normal(k4, (dec_channels,), jnp.float32) * 0.01

    def __call__(self, x):
        return simple_encoder_decoder_forward(
            x, self.enc_w, self.enc_b, self.dec_w, self.dec_b)


if __name__ == "__main__":
    key = jax.random.PRNGKey(0)
    k_x, k_p = jax.random.split(key)

    N, C, H, W = 2, 4, 16, 16
    x = jax.random.normal(k_x, (N, C, H, W), jnp.float32)

    model = SimpleEncoderDecoder(in_channels=C, enc_channels=8, dec_channels=1,
                                 key=k_p)

    out = jax.block_until_ready(model(x))
    assert out.shape == (N, 1, H, W), out.shape

    # pure-JAX reference (kernel uses bf16 MXU operands -> loose tolerance)
    def ref_forward(xx, ew, eb, dw, db):
        dn = ("NCHW", "OIHW", "NCHW")
        enc = jax.lax.conv_general_dilated(xx, ew, (1, 1), ((1, 1), (1, 1)),
                                           dimension_numbers=dn)
        enc = jnp.maximum(enc + eb.reshape(1, -1, 1, 1), 0.0)
        dec = jax.lax.conv_general_dilated(enc, dw, (1, 1), ((1, 1), (1, 1)),
                                           dimension_numbers=dn)
        return dec + db.reshape(1, -1, 1, 1)

    ref = ref_forward(x, model.enc_w, model.enc_b, model.dec_w, model.dec_b)
    err = float(jnp.max(jnp.abs(out - ref)))
    assert jnp.allclose(out, ref, atol=5e-2, rtol=5e-2), err

    print("KERNEL_OK")
</pallas_src>

<mosaic_0001>
module attributes {stable_mosaic.version = 11 : i64} {
  func.func @_fused_enc_dec_kernel(%arg0: i32, %arg1: memref<1x8x640xbf16, #tpu.memory_space<vmem>>, %arg2: memref<1x384xf32, #tpu.memory_space<vmem>>, %arg3: memref<9x8x8xbf16, #tpu.memory_space<vmem>>, %arg4: memref<8x1xf32, #tpu.memory_space<vmem>>, %arg5: memref<9x8x8xbf16, #tpu.memory_space<vmem>>, %arg6: memref<8x1xf32, #tpu.memory_space<vmem>>, %arg7: memref<1x8x384xf32, #tpu.memory_space<vmem>>, %arg8: memref<8x640xbf16, #tpu.memory_space<vmem>>) attributes {dimension_semantics = [#tpu.dimension_semantics<parallel>], iteration_bounds = array<i64: 2>, scalar_prefetch = 0 : i64, scratch_operands = 1 : i64, tpu.core_type = #tpu.core_type<tc>, window_params = [{transform_indices = @transform_0, window_bounds = array<i64: 1, 8, 640>}, {pipeline_mode = #tpu.pipeline_mode<synchronous>, transform_indices = @transform_1, window_bounds = array<i64: 1, 384>}, {pipeline_mode = #tpu.pipeline_mode<synchronous>, transform_indices = @transform_2, window_bounds = array<i64: 9, 8, 8>}, {pipeline_mode = #tpu.pipeline_mode<synchronous>, transform_indices = @transform_3, window_bounds = array<i64: 8, 1>}, {pipeline_mode = #tpu.pipeline_mode<synchronous>, transform_indices = @transform_4, window_bounds = array<i64: 9, 8, 8>}, {pipeline_mode = #tpu.pipeline_mode<synchronous>, transform_indices = @transform_5, window_bounds = array<i64: 8, 1>}, {transform_indices = @transform_6, window_bounds = array<i64: 1, 8, 384>}]} {
    %c0 = arith.constant 0 : index
    %c0_0 = arith.constant 0 : index
    %c0_1 = arith.constant 0 : index
    %0 = vector.load %arg3[%c0, %c0_0, %c0_1] : memref<9x8x8xbf16, #tpu.memory_space<vmem>>, vector<1x8x8xbf16>
    %1 = vector.shape_cast %0 : vector<1x8x8xbf16> to vector<8x8xbf16>
    %c0_2 = arith.constant 0 : index
    %c0_3 = arith.constant 0 : index
    %c109 = arith.constant 109 : index
    %2 = vector.load %arg1[%c0_2, %c0_3, %c109] : memref<1x8x640xbf16, #tpu.memory_space<vmem>>, vector<1x8x384xbf16>
    %3 = vector.shape_cast %2 : vector<1x8x384xbf16> to vector<8x384xbf16>
    %cst = arith.constant dense<0.000000e+00> : vector<8x384xf32>
    %4 = tpu.matmul %1, %3, %cst {dimension_numbers = #tpu.dot_dimension_numbers<[1], [0], [0], [1], [0, 0, 1, 1], [], []>} : vector<8x8xbf16>, vector<8x384xbf16>, vector<8x384xf32> -> vector<8x384xf32>
    %c1 = arith.constant 1 : index
    %c0_4 = arith.constant 0 : index
    %c0_5 = arith.constant 0 : index
    %5 = vector.load %arg3[%c1, %c0_4, %c0_5] : memref<9x8x8xbf16, #tpu.memory_space<vmem>>, vector<1x8x8xbf16>
    %6 = vector.shape_cast %5 : vector<1x8x8xbf16> to vector<8x8xbf16>
    %c0_6 = arith.constant 0 : index
    %c0_7 = arith.constant 0 : index
    %c110 = arith.constant 110 : index
    %7 = vector.load %arg1[%c0_6, %c0_7, %c110] : memref<1x8x640xbf16, #tpu.memory_space<vmem>>, vector<1x8x384xbf16>
    %8 = vector.shape_cast %7 : vector<1x8x384xbf16> to vector<8x384xbf16>
    %cst_8 = arith.constant dense<0.000000e+00> : vector<8x384xf32>
    %9 = tpu.matmul %6, %8, %cst_8 {dimension_numbers = #tpu.dot_dimension_numbers<[1], [0], [0], [1], [0, 0, 1, 1], [], []>} : vector<8x8xbf16>, vector<8x384xbf16>, vector<8x384xf32> -> vector<8x384xf32>
    %10 = arith.addf %4, %9 : vector<8x384xf32>
    %c2 = arith.constant 2 : index
    %c0_9 = arith.constant 0 : index
    %c0_10 = arith.constant 0 : index
    %11 = vector.load %arg3[%c2, %c0_9, %c0_10] : memref<9x8x8xbf16, #tpu.memory_space<vmem>>, vector<1x8x8xbf16>
    %12 = vector.shape_cast %11 : vector<1x8x8xbf16> to vector<8x8xbf16>
    %c0_11 = arith.constant 0 : index
    %c0_12 = arith.constant 0 : index
    %c111 = arith.constant 111 : index
    %13 = vector.load %arg1[%c0_11, %c0_12, %c111] : memref<1x8x640xbf16, #tpu.memory_space<vmem>>, vector<1x8x384xbf16>
    %14 = vector.shape_cast %13 : vector<1x8x384xbf16> to vector<8x384xbf16>
    %cst_13 = arith.constant dense<0.000000e+00> : vector<8x384xf32>
    %15 = tpu.matmul %12, %14, %cst_13 {dimension_numbers = #tpu.dot_dimension_numbers<[1], [0], [0], [1], [0, 0, 1, 1], [], []>} : vector<8x8xbf16>, vector<8x384xbf16>, vector<8x384xf32> -> vector<8x384xf32>
    %16 = arith.addf %10, %15 : vector<8x384xf32>
    %c3 = arith.constant 3 : index
    %c0_14 = arith.constant 0 : index
    %c0_15 = arith.constant 0 : index
    %17 = vector.load %arg3[%c3, %c0_14, %c0_15] : memref<9x8x8xbf16, #tpu.memory_space<vmem>>, vector<1x8x8xbf16>
    %18 = vector.shape_cast %17 : vector<1x8x8xbf16> to vector<8x8xbf16>
    %c0_16 = arith.constant 0 : index
    %c0_17 = arith.constant 0 : index
    %c127 = arith.constant 127 : index
    %19 = vector.load %arg1[%c0_16, %c0_17, %c127] : memref<1x8x640xbf16, #tpu.memory_space<vmem>>, vector<1x8x384xbf16>
    %20 = vector.shape_cast %19 : vector<1x8x384xbf16> to vector<8x384xbf16>
    %cst_18 = arith.constant dense<0.000000e+00> : vector<8x384xf32>
    %21 = tpu.matmul %18, %20, %cst_18 {dimension_numbers = #tpu.dot_dimension_numbers<[1], [0], [0], [1], [0, 0, 1, 1], [], []>} : vector<8x8xbf16>, vector<8x384xbf16>, vector<8x384xf32> -> vector<8x384xf32>
    %22 = arith.addf %16, %21 : vector<8x384xf32>
    %c4 = arith.constant 4 : index
    %c0_19 = arith.constant 0 : index
    %c0_20 = arith.constant 0 : index
    %23 = vector.load %arg3[%c4, %c0_19, %c0_20] : memref<9x8x8xbf16, #tpu.memory_space<vmem>>, vector<1x8x8xbf16>
    %24 = vector.shape_cast %23 : vector<1x8x8xbf16> to vector<8x8xbf16>
    %c0_21 = arith.constant 0 : index
    %c0_22 = arith.constant 0 : index
    %c128 = arith.constant 128 : index
    %25 = vector.load %arg1[%c0_21, %c0_22, %c128] : memref<1x8x640xbf16, #tpu.memory_space<vmem>>, vector<1x8x384xbf16>
    %26 = vector.shape_cast %25 : vector<1x8x384xbf16> to vector<8x384xbf16>
    %cst_23 = arith.constant dense<0.000000e+00> : vector<8x384xf32>
    %27 = tpu.matmul %24, %26, %cst_23 {dimension_numbers = #tpu.dot_dimension_numbers<[1], [0], [0], [1], [0, 0, 1, 1], [], []>} : vector<8x8xbf16>, vector<8x384xbf16>, vector<8x384xf32> -> vector<8x384xf32>
    %28 = arith.addf %22, %27 : vector<8x384xf32>
    %c5 = arith.constant 5 : index
    %c0_24 = arith.constant 0 : index
    %c0_25 = arith.constant 0 : index
    %29 = vector.load %arg3[%c5, %c0_24, %c0_25] : memref<9x8x8xbf16, #tpu.memory_space<vmem>>, vector<1x8x8xbf16>
    %30 = vector.shape_cast %29 : vector<1x8x8xbf16> to vector<8x8xbf16>
    %c0_26 = arith.constant 0 : index
    %c0_27 = arith.constant 0 : index
    %c129 = arith.constant 129 : index
    %31 = vector.load %arg1[%c0_26, %c0_27, %c129] : memref<1x8x640xbf16, #tpu.memory_space<vmem>>, vector<1x8x384xbf16>
    %32 = vector.shape_cast %31 : vector<1x8x384xbf16> to vector<8x384xbf16>
    %cst_28 = arith.constant dense<0.000000e+00> : vector<8x384xf32>
    %33 = tpu.matmul %30, %32, %cst_28 {dimension_numbers = #tpu.dot_dimension_numbers<[1], [0], [0], [1], [0, 0, 1, 1], [], []>} : vector<8x8xbf16>, vector<8x384xbf16>, vector<8x384xf32> -> vector<8x384xf32>
    %34 = arith.addf %28, %33 : vector<8x384xf32>
    %c6 = arith.constant 6 : index
    %c0_29 = arith.constant 0 : index
    %c0_30 = arith.constant 0 : index
    %35 = vector.load %arg3[%c6, %c0_29, %c0_30] : memref<9x8x8xbf16, #tpu.memory_space<vmem>>, vector<1x8x8xbf16>
    %36 = vector.shape_cast %35 : vector<1x8x8xbf16> to vector<8x8xbf16>
    %c0_31 = arith.constant 0 : index
    %c0_32 = arith.constant 0 : index
    %c145 = arith.constant 145 : index
    %37 = vector.load %arg1[%c0_31, %c0_32, %c145] : memref<1x8x640xbf16, #tpu.memory_space<vmem>>, vector<1x8x384xbf16>
    %38 = vector.shape_cast %37 : vector<1x8x384xbf16> to vector<8x384xbf16>
    %cst_33 = arith.constant dense<0.000000e+00> : vector<8x384xf32>
    %39 = tpu.matmul %36, %38, %cst_33 {dimension_numbers = #tpu.dot_dimension_numbers<[1], [0], [0], [1], [0, 0, 1, 1], [], []>} : vector<8x8xbf16>, vector<8x384xbf16>, vector<8x384xf32> -> vector<8x384xf32>
    %40 = arith.addf %34, %39 : vector<8x384xf32>
    %c7 = arith.constant 7 : index
    %c0_34 = arith.constant 0 : index
    %c0_35 = arith.constant 0 : index
    %41 = vector.load %arg3[%c7, %c0_34, %c0_35] : memref<9x8x8xbf16, #tpu.memory_space<vmem>>, vector<1x8x8xbf16>
    %42 = vector.shape_cast %41 : vector<1x8x8xbf16> to vector<8x8xbf16>
    %c0_36 = arith.constant 0 : index
    %c0_37 = arith.constant 0 : index
    %c146 = arith.constant 146 : index
    %43 = vector.load %arg1[%c0_36, %c0_37, %c146] : memref<1x8x640xbf16, #tpu.memory_space<vmem>>, vector<1x8x384xbf16>
    %44 = vector.shape_cast %43 : vector<1x8x384xbf16> to vector<8x384xbf16>
    %cst_38 = arith.constant dense<0.000000e+00> : vector<8x384xf32>
    %45 = tpu.matmul %42, %44, %cst_38 {dimension_numbers = #tpu.dot_dimension_numbers<[1], [0], [0], [1], [0, 0, 1, 1], [], []>} : vector<8x8xbf16>, vector<8x384xbf16>, vector<8x384xf32> -> vector<8x384xf32>
    %46 = arith.addf %40, %45 : vector<8x384xf32>
    %c8 = arith.constant 8 : index
    %c0_39 = arith.constant 0 : index
    %c0_40 = arith.constant 0 : index
    %47 = vector.load %arg3[%c8, %c0_39, %c0_40] : memref<9x8x8xbf16, #tpu.memory_space<vmem>>, vector<1x8x8xbf16>
    %48 = vector.shape_cast %47 : vector<1x8x8xbf16> to vector<8x8xbf16>
    %c0_41 = arith.constant 0 : index
    %c0_42 = arith.constant 0 : index
    %c147 = arith.constant 147 : index
    %49 = vector.load %arg1[%c0_41, %c0_42, %c147] : memref<1x8x640xbf16, #tpu.memory_space<vmem>>, vector<1x8x384xbf16>
    %50 = vector.shape_cast %49 : vector<1x8x384xbf16> to vector<8x384xbf16>
    %cst_43 = arith.constant dense<0.000000e+00> : vector<8x384xf32>
    %51 = tpu.matmul %48, %50, %cst_43 {dimension_numbers = #tpu.dot_dimension_numbers<[1], [0], [0], [1], [0, 0, 1, 1], [], []>} : vector<8x8xbf16>, vector<8x384xbf16>, vector<8x384xf32> -> vector<8x384xf32>
    %52 = arith.addf %46, %51 : vector<8x384xf32>
    %c0_44 = arith.constant 0 : index
    %c0_45 = arith.constant 0 : index
    %53 = vector.load %arg4[%c0_44, %c0_45] : memref<8x1xf32, #tpu.memory_space<vmem>>, vector<8x1xf32>
    %54 = vector.broadcast %53 : vector<8x1xf32> to vector<8x384xf32>
    %55 = arith.addf %52, %54 : vector<8x384xf32>
    %cst_46 = arith.constant 0.000000e+00 : f32
    %56 = vector.broadcast %cst_46 : f32 to vector<8x384xf32>
    %57 = arith.maximumf %55, %56 : vector<8x384xf32>
    %c0_47 = arith.constant 0 : index
    %c0_48 = arith.constant 0 : index
    %58 = vector.load %arg2[%c0_47, %c0_48] : memref<1x384xf32, #tpu.memory_space<vmem>>, vector<1x384xf32>
    %59 = vector.broadcast %58 : vector<1x384xf32> to vector<8x384xf32>
    %60 = arith.mulf %57, %59 : vector<8x384xf32>
    %cst_49 = arith.constant 0.000000e+00 : bf16
    %61 = vector.broadcast %cst_49 : bf16 to vector<8x128xbf16>
    %c0_50 = arith.constant 0 : index
    %c0_51 = arith.constant 0 : index
    %62 = vector.load %arg8[%c0_50, %c0_51] : memref<8x640xbf16, #tpu.memory_space<vmem>>, vector<8x128xbf16>
    tpu.vector_store %arg8[%c0_50, %c0_51], %61 {strides = array<i32>} : memref<8x640xbf16, #tpu.memory_space<vmem>>, vector<8x128xbf16>,
    %cst_52 = arith.constant 0.000000e+00 : bf16
    %63 = vector.broadcast %cst_52 : bf16 to vector<8x128xbf16>
    %c0_53 = arith.constant 0 : index
    %c512 = arith.constant 512 : index
    %64 = vector.load %arg8[%c0_53, %c512] : memref<8x640xbf16, #tpu.memory_space<vmem>>, vector<8x128xbf16>
    tpu.vector_store %arg8[%c0_53, %c512], %63 {strides = array<i32>} : memref<8x640xbf16, #tpu.memory_space<vmem>>, vector<8x128xbf16>,
    %65 = arith.truncf %60 : vector<8x384xf32> to vector<8x384xbf16>
    %c0_54 = arith.constant 0 : index
    %c128_55 = arith.constant 128 : index
    %66 = vector.load %arg8[%c0_54, %c128_55] : memref<8x640xbf16, #tpu.memory_space<vmem>>, vector<8x384xbf16>
    tpu.vector_store %arg8[%c0_54, %c128_55], %65 {strides = array<i32>} : memref<8x640xbf16, #tpu.memory_space<vmem>>, vector<8x384xbf16>,
    %c0_56 = arith.constant 0 : index
    %c0_57 = arith.constant 0 : index
    %c0_58 = arith.constant 0 : index
    %67 = vector.load %arg5[%c0_56, %c0_57, %c0_58] : memref<9x8x8xbf16, #tpu.memory_space<vmem>>, vector<1x8x8xbf16>
    %68 = vector.shape_cast %67 : vector<1x8x8xbf16> to vector<8x8xbf16>
    %c0_59 = arith.constant 0 : index
    %c109_60 = arith.constant 109 : index
    %69 = vector.load %arg8[%c0_59, %c109_60] : memref<8x640xbf16, #tpu.memory_space<vmem>>, vector<8x384xbf16>
    %cst_61 = arith.constant dense<0.000000e+00> : vector<8x384xf32>
    %70 = tpu.matmul %68, %69, %cst_61 {dimension_numbers = #tpu.dot_dimension_numbers<[1], [0], [0], [1], [0, 0, 1, 1], [], []>} : vector<8x8xbf16>, vector<8x384xbf16>, vector<8x384xf32> -> vector<8x384xf32>
    %c1_62 = arith.constant 1 : index
    %c0_63 = arith.constant 0 : index
    %c0_64 = arith.constant 0 : index
    %71 = vector.load %arg5[%c1_62, %c0_63, %c0_64] : memref<9x8x8xbf16, #tpu.memory_space<vmem>>, vector<1x8x8xbf16>
    %72 = vector.shape_cast %71 : vector<1x8x8xbf16> to vector<8x8xbf16>
    %c0_65 = arith.constant 0 : index
    %c110_66 = arith.constant 110 : index
    %73 = vector.load %arg8[%c0_65, %c110_66] : memref<8x640xbf16, #tpu.memory_space<vmem>>, vector<8x384xbf16>
    %cst_67 = arith.constant dense<0.000000e+00> : vector<8x384xf32>
    %74 = tpu.matmul %72, %73, %cst_67 {dimension_numbers = #tpu.dot_dimension_numbers<[1], [0], [0], [1], [0, 0, 1, 1], [], []>} : vector<8x8xbf16>, vector<8x384xbf16>, vector<8x384xf32> -> vector<8x384xf32>
    %75 = arith.addf %70, %74 : vector<8x384xf32>
    %c2_68 = arith.constant 2 : index
    %c0_69 = arith.constant 0 : index
    %c0_70 = arith.constant 0 : index
    %76 = vector.load %arg5[%c2_68, %c0_69, %c0_70] : memref<9x8x8xbf16, #tpu.memory_space<vmem>>, vector<1x8x8xbf16>
    %77 = vector.shape_cast %76 : vector<1x8x8xbf16> to vector<8x8xbf16>
    %c0_71 = arith.constant 0 : index
    %c111_72 = arith.constant 111 : index
    %78 = vector.load %arg8[%c0_71, %c111_72] : memref<8x640xbf16, #tpu.memory_space<vmem>>, vector<8x384xbf16>
    %cst_73 = arith.constant dense<0.000000e+00> : vector<8x384xf32>
    %79 = tpu.matmul %77, %78, %cst_73 {dimension_numbers = #tpu.dot_dimension_numbers<[1], [0], [0], [1], [0, 0, 1, 1], [], []>} : vector<8x8xbf16>, vector<8x384xbf16>, vector<8x384xf32> -> vector<8x384xf32>
    %80 = arith.addf %75, %79 : vector<8x384xf32>
    %c3_74 = arith.constant 3 : index
    %c0_75 = arith.constant 0 : index
    %c0_76 = arith.constant 0 : index
    %81 = vector.load %arg5[%c3_74, %c0_75, %c0_76] : memref<9x8x8xbf16, #tpu.memory_space<vmem>>, vector<1x8x8xbf16>
    %82 = vector.shape_cast %81 : vector<1x8x8xbf16> to vector<8x8xbf16>
    %c0_77 = arith.constant 0 : index
    %c127_78 = arith.constant 127 : index
    %83 = vector.load %arg8[%c0_77, %c127_78] : memref<8x640xbf16, #tpu.memory_space<vmem>>, vector<8x384xbf16>
    %cst_79 = arith.constant dense<0.000000e+00> : vector<8x384xf32>
    %84 = tpu.matmul %82, %83, %cst_79 {dimension_numbers = #tpu.dot_dimension_numbers<[1], [0], [0], [1], [0, 0, 1, 1], [], []>} : vector<8x8xbf16>, vector<8x384xbf16>, vector<8x384xf32> -> vector<8x384xf32>
    %85 = arith.addf %80, %84 : vector<8x384xf32>
    %c4_80 = arith.constant 4 : index
    %c0_81 = arith.constant 0 : index
    %c0_82 = arith.constant 0 : index
    %86 = vector.load %arg5[%c4_80, %c0_81, %c0_82] : memref<9x8x8xbf16, #tpu.memory_space<vmem>>, vector<1x8x8xbf16>
    %87 = vector.shape_cast %86 : vector<1x8x8xbf16> to vector<8x8xbf16>
    %c0_83 = arith.constant 0 : index
    %c128_84 = arith.constant 128 : index
    %88 = vector.load %arg8[%c0_83, %c128_84] : memref<8x640xbf16, #tpu.memory_space<vmem>>, vector<8x384xbf16>
    %cst_85 = arith.constant dense<0.000000e+00> : vector<8x384xf32>
    %89 = tpu.matmul %87, %88, %cst_85 {dimension_numbers = #tpu.dot_dimension_numbers<[1], [0], [0], [1], [0, 0, 1, 1], [], []>} : vector<8x8xbf16>, vector<8x384xbf16>, vector<8x384xf32> -> vector<8x384xf32>
    %90 = arith.addf %85, %89 : vector<8x384xf32>
    %c5_86 = arith.constant 5 : index
    %c0_87 = arith.constant 0 : index
    %c0_88 = arith.constant 0 : index
    %91 = vector.load %arg5[%c5_86, %c0_87, %c0_88] : memref<9x8x8xbf16, #tpu.memory_space<vmem>>, vector<1x8x8xbf16>
    %92 = vector.shape_cast %91 : vector<1x8x8xbf16> to vector<8x8xbf16>
    %c0_89 = arith.constant 0 : index
    %c129_90 = arith.constant 129 : index
    %93 = vector.load %arg8[%c0_89, %c129_90] : memref<8x640xbf16, #tpu.memory_space<vmem>>, vector<8x384xbf16>
    %cst_91 = arith.constant dense<0.000000e+00> : vector<8x384xf32>
    %94 = tpu.matmul %92, %93, %cst_91 {dimension_numbers = #tpu.dot_dimension_numbers<[1], [0], [0], [1], [0, 0, 1, 1], [], []>} : vector<8x8xbf16>, vector<8x384xbf16>, vector<8x384xf32> -> vector<8x384xf32>
    %95 = arith.addf %90, %94 : vector<8x384xf32>
    %c6_92 = arith.constant 6 : index
    %c0_93 = arith.constant 0 : index
    %c0_94 = arith.constant 0 : index
    %96 = vector.load %arg5[%c6_92, %c0_93, %c0_94] : memref<9x8x8xbf16, #tpu.memory_space<vmem>>, vector<1x8x8xbf16>
    %97 = vector.shape_cast %96 : vector<1x8x8xbf16> to vector<8x8xbf16>
    %c0_95 = arith.constant 0 : index
    %c145_96 = arith.constant 145 : index
    %98 = vector.load %arg8[%c0_95, %c145_96] : memref<8x640xbf16, #tpu.memory_space<vmem>>, vector<8x384xbf16>
    %cst_97 = arith.constant dense<0.000000e+00> : vector<8x384xf32>
    %99 = tpu.matmul %97, %98, %cst_97 {dimension_numbers = #tpu.dot_dimension_numbers<[1], [0], [0], [1], [0, 0, 1, 1], [], []>} : vector<8x8xbf16>, vector<8x384xbf16>, vector<8x384xf32> -> vector<8x384xf32>
    %100 = arith.addf %95, %99 : vector<8x384xf32>
    %c7_98 = arith.constant 7 : index
    %c0_99 = arith.constant 0 : index
    %c0_100 = arith.constant 0 : index
    %101 = vector.load %arg5[%c7_98, %c0_99, %c0_100] : memref<9x8x8xbf16, #tpu.memory_space<vmem>>, vector<1x8x8xbf16>
    %102 = vector.shape_cast %101 : vector<1x8x8xbf16> to vector<8x8xbf16>
    %c0_101 = arith.constant 0 : index
    %c146_102 = arith.constant 146 : index
    %103 = vector.load %arg8[%c0_101, %c146_102] : memref<8x640xbf16, #tpu.memory_space<vmem>>, vector<8x384xbf16>
    %cst_103 = arith.constant dense<0.000000e+00> : vector<8x384xf32>
    %104 = tpu.matmul %102, %103, %cst_103 {dimension_numbers = #tpu.dot_dimension_numbers<[1], [0], [0], [1], [0, 0, 1, 1], [], []>} : vector<8x8xbf16>, vector<8x384xbf16>, vector<8x384xf32> -> vector<8x384xf32>
    %105 = arith.addf %100, %104 : vector<8x384xf32>
    %c8_104 = arith.constant 8 : index
    %c0_105 = arith.constant 0 : index
    %c0_106 = arith.constant 0 : index
    %106 = vector.load %arg5[%c8_104, %c0_105, %c0_106] : memref<9x8x8xbf16, #tpu.memory_space<vmem>>, vector<1x8x8xbf16>
    %107 = vector.shape_cast %106 : vector<1x8x8xbf16> to vector<8x8xbf16>
    %c0_107 = arith.constant 0 : index
    %c147_108 = arith.constant 147 : index
    %108 = vector.load %arg8[%c0_107, %c147_108] : memref<8x640xbf16, #tpu.memory_space<vmem>>, vector<8x384xbf16>
    %cst_109 = arith.constant dense<0.000000e+00> : vector<8x384xf32>
    %109 = tpu.matmul %107, %108, %cst_109 {dimension_numbers = #tpu.dot_dimension_numbers<[1], [0], [0], [1], [0, 0, 1, 1], [], []>} : vector<8x8xbf16>, vector<8x384xbf16>, vector<8x384xf32> -> vector<8x384xf32>
    %110 = arith.addf %105, %109 : vector<8x384xf32>
    %c0_110 = arith.constant 0 : index
    %c0_111 = arith.constant 0 : index
    %111 = vector.load %arg6[%c0_110, %c0_111] : memref<8x1xf32, #tpu.memory_space<vmem>>, vector<8x1xf32>
    %112 = vector.broadcast %111 : vector<8x1xf32> to vector<8x384xf32>
    %113 = arith.addf %110, %112 : vector<8x384xf32>
    %c0_112 = arith.constant 0 : index
    %c0_113 = arith.constant 0 : index
    %c0_114 = arith.constant 0 : index
    %114 = vector.load %arg7[%c0_112, %c0_113, %c0_114] : memref<1x8x384xf32, #tpu.memory_space<vmem>>, vector<1x8x384xf32>
    %115 = vector.shape_cast %114 : vector<1x8x384xf32> to vector<8x384xf32>
    %116 = vector.shape_cast %113 : vector<8x384xf32> to vector<1x8x384xf32>
    tpu.vector_store %arg7[%c0_112, %c0_113, %c0_114], %116 {strides = array<i32>} : memref<1x8x384xf32, #tpu.memory_space<vmem>>, vector<1x8x384xf32>,
    return
  }
  func.func @transform_0(%arg0: i32) -> (i32, i32, i32) {
    %c0_i32 = arith.constant 0 : i32
    %c0_i32_0 = arith.constant 0 : i32
    %c0_i32_1 = arith.constant 0 : i32
    return %arg0, %c0_i32, %c0_i32_0 : i32, i32, i32
  }
  func.func @transform_1(%arg0: i32) -> (i32, i32) {
    %c0_i32 = arith.constant 0 : i32
    %c0_i32_0 = arith.constant 0 : i32
    %c0_i32_1 = arith.constant 0 : i32
    return %c0_i32, %c0_i32_0 : i32, i32
  }
  func.func @transform_2(%arg0: i32) -> (i32, i32, i32) {
    %c0_i32 = arith.constant 0 : i32
    %c0_i32_0 = arith.constant 0 : i32
    %c0_i32_1 = arith.constant 0 : i32
    %c0_i32_2 = arith.constant 0 : i32
    return %c0_i32, %c0_i32_0, %c0_i32_1 : i32, i32, i32
  }
  func.func @transform_3(%arg0: i32) -> (i32, i32) {
    %c0_i32 = arith.constant 0 : i32
    %c0_i32_0 = arith.constant 0 : i32
    %c0_i32_1 = arith.constant 0 : i32
    return %c0_i32, %c0_i32_0 : i32, i32
  }
  func.func @transform_4(%arg0: i32) -> (i32, i32, i32) {
    %c0_i32 = arith.constant 0 : i32
    %c0_i32_0 = arith.constant 0 : i32
    %c0_i32_1 = arith.constant 0 : i32
    %c0_i32_2 = arith.constant 0 : i32
    return %c0_i32, %c0_i32_0, %c0_i32_1 : i32, i32, i32
  }
  func.func @transform_5(%arg0: i32) -> (i32, i32) {
    %c0_i32 = arith.constant 0 : i32
    %c0_i32_0 = arith.constant 0 : i32
    %c0_i32_1 = arith.constant 0 : i32
    return %c0_i32, %c0_i32_0 : i32, i32
  }
  func.func @transform_6(%arg0: i32) -> (i32, i32, i32) {
    %c0_i32 = arith.constant 0 : i32
    %c0_i32_0 = arith.constant 0 : i32
    %c0_i32_1 = arith.constant 0 : i32
    return %arg0, %c0_i32, %c0_i32_0 : i32, i32, i32
  }
}

</mosaic_0001>

<llo_original>
// kernel: tpu_custom_call.1
$region0: #{tpu_custom_call.1}
  #allocation0 [shape = 'u32[]', space=smem, size = 0x4, offset = 0x4, fixed_abs, tag = 'smem constant byte address 0x4 - core index']
  #allocation1 [shape = 'u32[144,128]{1,0:T(1,128)}', space=vmem, size = 0x12000, scoped, tag = 'internal scratch']
  #allocation2 [shape = 'bf16[8,640]{1,0:T(8,128)(2,1)}', space=vmem, size = 0x2800, scoped, tag = 'scratch operand']
  %s0 = inlined_call_operand.vmem [shape: bf16[2,8,640], index: 0, kind: input, shape index: {}]
  %s1 = inlined_call_operand.vmem [shape: f32[1,384], index: 1, kind: input, shape index: {}]
  %s2 = inlined_call_operand.vmem [shape: bf16[9,8,8], index: 2, kind: input, shape index: {}]
  %s3 = inlined_call_operand.vmem [shape: f32[8,1], index: 3, kind: input, shape index: {}]
  %s4 = inlined_call_operand.vmem [shape: bf16[9,8,8], index: 4, kind: input, shape index: {}]
  %s5 = inlined_call_operand.vmem [shape: f32[8,1], index: 5, kind: input, shape index: {}]
  %s6 = inlined_call_operand.hbm [shape: f32[2,8,384], index: 6, kind: output, shape index: {}]
  %s7 = sld [smem:[#allocation0]]
  $region57: #{tpu_custom_call.1} parent=0
    _
  %s9 = ssub.s32 1, %s7
  %s10 = scalar_select 0, %s9, %s7
  $region1: #{tpu_custom_call.1} parent=0
    #allocation3 [shape = 'u8[24576]{0}', space=vmem, size = 0x6000, scoped, tag = 'output window, operand 0']
    #allocation4 [shape = 's32[2]{0}', space=sflag, size = 0x8, scoped, tag = 'scoped memory for tpu_custom_call.1']
    %11 = vsyncpa [#allocation4], 0
    %s12 = scalar_lea.sflag [#allocation4], 1
    %13 = vsyncpa %s12, 0
    loop: start=0, step=1, limit=4
    $region2: #{tpu_custom_call.1} parent=1 // loop_pre_header
      _
    $region3: #{tpu_custom_call.1} parent=1 // loop_header
      %s15 = sphi 0, %s19
      %p16 = scmp.ge.s32.totalorder %s15, 4
      %s25 = sphi 0, %s27
      %s28 = sphi 0, %s25
      %s29 = sphi 0, %s28
      %s45 = sphi 0, %s29
      %s49 = sphi 0, %s49
      %s51 = sphi 0, %s49
      %s52 = sphi 0, %s51
      %s66 = sphi 0, %s52
      %s70 = sphi 0, %s70
      %s72 = sphi 0, %s70
      %s73 = sphi 0, %s72
      %s87 = sphi 0, %s73
      %s91 = sphi 0, %s91
      %s93 = sphi 0, %s91
      %s94 = sphi 0, %s93
      %s108 = sphi 0, %s94
      %s112 = sphi 0, %s112
      %s114 = sphi 0, %s112
      %s115 = sphi 0, %s114
      %s129 = sphi 0, %s115
      %s133 = sphi 0, %s133
      %s135 = sphi 0, %s133
      %s136 = sphi 0, %s135
      %s150 = sphi 0, %s136
      %s156 = sphi 0, %s158
      %s159 = sphi 0, %s156
      %s160 = sphi 0, %s159
      %s176 = sphi 0, %s160
    $region4: #{tpu_custom_call.1} parent=1 // loop_header_branch
      %18 = sbr.rel (%p16) target = $region8
    $region5: #{tpu_custom_call.1} parent=1 // loop_body
      %s20 = ssub.s32 %s15, 1
      %s21 = ssub.s32 %s15, 2
      %s22 = sadd.s32 %s15, 1
      %s23 = ssub.s32 %s15, %s22
      %p24 = scmp.eq.s32.totalorder %s23, 0
      %s26 = sadd.s32 %s25, 1
      %s27 = scalar_select %p24, %s25, %s26
      %p30 = pneg %p24
      %p31 = scmp.eq.s32.totalorder %s15, 1
      %p32 = por %p30, %p31
      %p33 = scmp.ne.s32.totalorder %s25, %s28
      %p34 = scmp.eq.s32.totalorder %s15, 0
      %p35 = por %p33, %p34
      %p36 = scmp.ne.s32.totalorder %s25, %s28
      %p37 = scmp.eq.s32.totalorder %s20, 1
      %p38 = por %p36, %p37
      %p39 = scmp.ne.s32.totalorder %s28, %s29
      %p40 = scmp.eq.s32.totalorder %s20, 0
      %p41 = por %p39, %p40
      %p42 = scmp.ne.s32.totalorder %s28, %s29
      %p43 = scmp.eq.s32.totalorder %s21, 1
      %p44 = por %p42, %p43
      %p46 = scmp.ne.s32.totalorder %s29, %s45
      %p47 = scmp.eq.s32.totalorder %s21, 0
      %p48 = por %p46, %p47
      %s50 = sadd.s32 %s49, 1
      %p53 = scmp.eq.s32.totalorder %s15, 1
      %p54 = scmp.ne.s32.totalorder %s49, %s51
      %p55 = scmp.eq.s32.totalorder %s15, 0
      %p56 = por %p54, %p55
      %p57 = scmp.ne.s32.totalorder %s49, %s51
      %p58 = scmp.eq.s32.totalorder %s20, 1
      %p59 = por %p57, %p58
      %p60 = scmp.ne.s32.totalorder %s51, %s52
      %p61 = scmp.eq.s32.totalorder %s20, 0
      %p62 = por %p60, %p61
      %p63 = scmp.ne.s32.totalorder %s51, %s52
      %p64 = scmp.eq.s32.totalorder %s21, 1
      %p65 = por %p63, %p64
      %p67 = scmp.ne.s32.totalorder %s52, %s66
      %p68 = scmp.eq.s32.totalorder %s21, 0
      %p69 = por %p67, %p68
      %s71 = sadd.s32 %s70, 1
      %p74 = scmp.eq.s32.totalorder %s15, 1
      %p75 = scmp.ne.s32.totalorder %s70, %s72
      %p76 = scmp.eq.s32.totalorder %s15, 0
      %p77 = por %p75, %p76
      %p78 = scmp.ne.s32.totalorder %s70, %s72
      %p79 = scmp.eq.s32.totalorder %s20, 1
      %p80 = por %p78, %p79
      %p81 = scmp.ne.s32.totalorder %s72, %s73
      %p82 = scmp.eq.s32.totalorder %s20, 0
      %p83 = por %p81, %p82
      %p84 = scmp.ne.s32.totalorder %s72, %s73
      %p85 = scmp.eq.s32.totalorder %s21, 1
      %p86 = por %p84, %p85
      %p88 = scmp.ne.s32.totalorder %s73, %s87
      %p89 = scmp.eq.s32.totalorder %s21, 0
      %p90 = por %p88, %p89
      %s92 = sadd.s32 %s91, 1
      %p95 = scmp.eq.s32.totalorder %s15, 1
      %p96 = scmp.ne.s32.totalorder %s91, %s93
      %p97 = scmp.eq.s32.totalorder %s15, 0
      %p98 = por %p96, %p97
      %p99 = scmp.ne.s32.totalorder %s91, %s93
      %p100 = scmp.eq.s32.totalorder %s20, 1
      %p101 = por %p99, %p100
      %p102 = scmp.ne.s32.totalorder %s93, %s94
      %p103 = scmp.eq.s32.totalorder %s20, 0
      %p104 = por %p102, %p103
      %p105 = scmp.ne.s32.totalorder %s93, %s94
      %p106 = scmp.eq.s32.totalorder %s21, 1
      %p107 = por %p105, %p106
      %p109 = scmp.ne.s32.totalorder %s94, %s108
      %p110 = scmp.eq.s32.totalorder %s21, 0
      %p111 = por %p109, %p110
      %s113 = sadd.s32 %s112, 1
      %p116 = scmp.eq.s32.totalorder %s15, 1
      %p117 = scmp.ne.s32.totalorder %s112, %s114
      %p118 = scmp.eq.s32.totalorder %s15, 0
      %p119 = por %p117, %p118
      %p120 = scmp.ne.s32.totalorder %s112, %s114
      %p121 = scmp.eq.s32.totalorder %s20, 1
      %p122 = por %p120, %p121
      %p123 = scmp.ne.s32.totalorder %s114, %s115
      %p124 = scmp.eq.s32.totalorder %s20, 0
      %p125 = por %p123, %p124
      %p126 = scmp.ne.s32.totalorder %s114, %s115
      %p127 = scmp.eq.s32.totalorder %s21, 1
      %p128 = por %p126, %p127
      %p130 = scmp.ne.s32.totalorder %s115, %s129
      %p131 = scmp.eq.s32.totalorder %s21, 0
      %p132 = por %p130, %p131
      %s134 = sadd.s32 %s133, 1
      %p137 = scmp.eq.s32.totalorder %s15, 1
      %p138 = scmp.ne.s32.totalorder %s133, %s135
      %p139 = scmp.eq.s32.totalorder %s15, 0
      %p140 = por %p138, %p139
      %p141 = scmp.ne.s32.totalorder %s133, %s135
      %p142 = scmp.eq.s32.totalorder %s20, 1
      %p143 = por %p141, %p142
      %p144 = scmp.ne.s32.totalorder %s135, %s136
      %p145 = scmp.eq.s32.totalorder %s20, 0
      %p146 = por %p144, %p145
      %p147 = scmp.ne.s32.totalorder %s135, %s136
      %p148 = scmp.eq.s32.totalorder %s21, 1
      %p149 = por %p147, %p148
      %p151 = scmp.ne.s32.totalorder %s136, %s150
      %p152 = scmp.eq.s32.totalorder %s21, 0
      %p153 = por %p151, %p152
      %s154 = ssub.s32 %s15, %s22
      %p155 = scmp.eq.s32.totalorder %s154, 0
      %s157 = sadd.s32 %s156, 1
      %s158 = scalar_select %p155, %s156, %s157
      %p161 = pneg %p155
      %p162 = scmp.eq.s32.totalorder %s15, 1
      %p163 = por %p161, %p162
      %p164 = scmp.ne.s32.totalorder %s156, %s159
      %p165 = scmp.eq.s32.totalorder %s15, 0
      %p166 = por %p164, %p165
      %p167 = scmp.ne.s32.totalorder %s156, %s159
      %p168 = scmp.eq.s32.totalorder %s20, 1
      %p169 = por %p167, %p168
      %p170 = scmp.ne.s32.totalorder %s159, %s160
      %p171 = scmp.eq.s32.totalorder %s20, 0
      %p172 = por %p170, %p171
      %p173 = scmp.ne.s32.totalorder %s159, %s160
      %p174 = scmp.eq.s32.totalorder %s21, 1
      %p175 = por %p173, %p174
      %p177 = scmp.ne.s32.totalorder %s160, %s176
      %p178 = scmp.eq.s32.totalorder %s21, 0
      %p179 = por %p177, %p178
      %p180 = scmp.le.s32.totalorder 1, %s15
      %p181 = scmp.lt.s32.totalorder %s15, 3
      %p182 = pnand %p180, %p181
      %p183 = pneg %p182
      // Predicated region
      $region9: #{tpu_custom_call.1} parent=5 // pred_check
        _
      $region10: #{tpu_custom_call.1} parent=5 // pred_check_branch
        %185 = sbr.rel (%p182) target = $region12
      $region11: #{tpu_custom_call.1} parent=5 // pred_region
        %s186 = ssub.s32 %s15, 1
        // Predicated region
        $region13: #{tpu_custom_call.1} parent=11 // pred_check
          %p187 = pneg %p62
        $region14: #{tpu_custom_call.1} parent=11 // pred_check_branch
          %189 = sbr.rel (%p187) target = $region16
        $region15: #{tpu_custom_call.1} parent=11 // pred_region
          _
        $region16: #{tpu_custom_call.1} parent=11 // pred_fallthru
          _
        // Predicated region
        $region17: #{tpu_custom_call.1} parent=11 // pred_check
          %p190 = pneg %p83
        $region18: #{tpu_custom_call.1} parent=11 // pred_check_branch
          %192 = sbr.rel (%p190) target = $region20
        $region19: #{tpu_custom_call.1} parent=11 // pred_region
          _
        $region20: #{tpu_custom_call.1} parent=11 // pred_fallthru
          _
        // Predicated region
        $region21: #{tpu_custom_call.1} parent=11 // pred_check
          %p193 = pneg %p104
        $region22: #{tpu_custom_call.1} parent=11 // pred_check_branch
          %195 = sbr.rel (%p193) target = $region24
        $region23: #{tpu_custom_call.1} parent=11 // pred_region
          _
        $region24: #{tpu_custom_call.1} parent=11 // pred_fallthru
          _
        // Predicated region
        $region25: #{tpu_custom_call.1} parent=11 // pred_check
          %p196 = pneg %p125
        $region26: #{tpu_custom_call.1} parent=11 // pred_check_branch
          %198 = sbr.rel (%p196) target = $region28
        $region27: #{tpu_custom_call.1} parent=11 // pred_region
          _
        $region28: #{tpu_custom_call.1} parent=11 // pred_fallthru
          _
        // Predicated region
        $region29: #{tpu_custom_call.1} parent=11 // pred_check
          %p199 = pneg %p146
        $region30: #{tpu_custom_call.1} parent=11 // pred_check_branch
          %201 = sbr.rel (%p199) target = $region32
        $region31: #{tpu_custom_call.1} parent=11 // pred_region
          _
        $region32: #{tpu_custom_call.1} parent=11 // pred_fallthru
          _
      $region12: #{tpu_custom_call.1} parent=5 // pred_fallthru
        _
      %p202 = scmp.lt.s32.totalorder %s15, 2
      // Predicated region
      $region33: #{tpu_custom_call.1} parent=5 // pred_check
        %p203 = pneg %p202
      $region34: #{tpu_custom_call.1} parent=5 // pred_check_branch
        %205 = sbr.rel (%p203) target = $region36
      $region35: #{tpu_custom_call.1} parent=5 // pred_region
        // Predicated region
        $region37: #{tpu_custom_call.1} parent=35 // pred_check
          %p206 = pneg %p35
        $region38: #{tpu_custom_call.1} parent=35 // pred_check_branch
          %208 = sbr.rel (%p206) target = $region40
        $region39: #{tpu_custom_call.1} parent=35 // pred_region
          %p209 = scmp.lt.s32.totalorder %s15, 1
          %s210 = scalar_select %p209, %s15, 1
          %s211 = smul.addr %s210, 5
          %s212 = smul.addr %s211, 4
          %s213 = scalar_lea.vmem %s0, %s212
        $region40: #{tpu_custom_call.1} parent=35 // pred_fallthru
          _
      $region36: #{tpu_custom_call.1} parent=5 // pred_fallthru
        _
      %p214 = scmp.le.s32.totalorder 1, %s15
      %p215 = scmp.lt.s32.totalorder %s15, 3
      %p216 = pnand %p214, %p215
      %p217 = pneg %p216
      // Predicated region
      $region41: #{tpu_custom_call.1} parent=5 // pred_check
        _
      $region42: #{tpu_custom_call.1} parent=5 // pred_check_branch
        %219 = sbr.rel (%p216) target = $region44
      $region43: #{tpu_custom_call.1} parent=5 // pred_region
        %s220 = ssub.s32 %s15, 1
        %p221 = scmp.lt.s32.totalorder %s20, 1
        %s222 = scalar_select %p221, %s20, 1
        %s223 = smul.addr %s222, 5
        %s224 = smul.addr %s223, 4
        %s225 = scalar_lea.vmem %s0, %s224
        %p226 = pneg %p41
        %p227 = pneg %p38
        %p228 = pneg %p62
        %p229 = pneg %p59
        %p230 = pneg %p83
        %p231 = pneg %p80
        %p232 = pneg %p104
        %p233 = pneg %p101
        %p234 = pneg %p125
        %p235 = pneg %p122
        %p236 = pneg %p146
        %p237 = pneg %p143
        %p238 = pneg %p172
        %p239 = pneg %p169
        %s240 = sand.u32 %s159, 1
        %s241 = scalar_lea.sflag [#allocation4], %s240
        %s242 = sand.u32 %s159, 1
        %s243 = smul.addr %s242, 24
        %s244 = scalar_lea.vmem [#allocation3], %s243
        %p245 = scmp.lt.s32.totalorder %s20, 1
        %s246 = scalar_select %p245, %s20, 1
        %s247 = smul.addr %s246, 5
        %s248 = smul.addr %s247, 4
        %s249 = scalar_lea.vmem %s0, %s248
        %v251 = vld [vmem:[%s2] sm:$0xf]
        %v252 = vld [vmem:[%s249] sm:$0xff]
        %v253 = vld [vmem:[%s249 + $0x8] sm:$0xff]
        %s254 = scalar_lea.vmem %s2, 4
        %v255 = vld [vmem:[%s254] sm:$0xf]
        %v258 = vunpack.c.l.b16 %v252
        %v259 = vunpack.c.h.b16 %v252
        %v260 = vunpack.c.l.b16 %v253
        %v261 = vunpack.c.h.b16 %v253
        %v262 = vpack.c.b16 %v258, %v258
        %v263 = vpack.c.b16 %v259, %v259
        %v264 = vpack.c.b16 %v260, %v260
        %v265 = vpack.c.b16 %v261, %v261
        %266 = vrot.lane.b32.xlu0 %v262, 18
        %v267 = vpop.permute.xlu0 %266
        %268 = vrot.lane.b32.xlu0 %v263, 18
        %v269 = vpop.permute.xlu0 %268
        %270 = vrot.lane.b32.xlu0 %v264, 18
        %v271 = vpop.permute.xlu0 %270
        %272 = vrot.lane.b32.xlu0 %v265, 18
        %v273 = vpop.permute.xlu0 %272
        %vm274 = vcmask 146432
        %v275 = vsel %vm274, %v267, %v269
        %v276 = vsel %vm274, %v269, %v271
        %v277 = vsel %vm274, %v271, %v273
        %vm278 = vcmask 64512
        %v280 = vsel %vm278, %v255, 0
        %vm282 = vcmask 1043456
        %v284 = vsel %vm282, %v275, 0
        %v287 = vsel %vm282, %v276, 0
        %v290 = vsel %vm282, %v277, 0
        %292 = vmatprep.subr.bf16.mxu0 %v287
        %293 = vmatpush1.bf16.msra.mxu0 %v284
        %294 = vmatprep.subr.bf16.mxu0 0
        %295 = vmatpush1.bf16.msra.mxu0 0
        %296 = vmatprep.subr.bf16.mxu0 0
        %297 = vmatpush1.bf16.msra.mxu0 0
        %298 = vmatprep.subr.bf16.mxu0 0
        %299 = vmatpush1.bf16.msra.mxu0 0
        %300 = vmatprep.subr.bf16.mxu0 0
        %301 = vmatpush1.bf16.msra.mxu0 0
        %302 = vmatprep.subr.bf16.mxu0 0
        %303 = vmatpush1.bf16.msra.mxu0 0
        %304 = vmatprep.subr.bf16.mxu0 0
        %305 = vmatpush1.bf16.msra.mxu0 0
        %306 = vmatprep.subr.bf16.mxu0 0
        %307 = vmatpush1.bf16.msra.mxu0 0
        %308 = vmatprep.subr.bf16.mxu0 0
        %309 = vmatpush1.bf16.msra.mxu0 0
        %310 = vmatprep.subr.bf16.mxu0 0
        %311 = vmatpush1.bf16.msra.mxu0 0
        %312 = vmatprep.subr.bf16.mxu0 0
        %313 = vmatpush1.bf16.msra.mxu0 0
        %314 = vmatprep.subr.bf16.mxu0 0
        %315 = vmatpush1.bf16.msra.mxu0 0
        %316 = vmatprep.subr.bf16.mxu0 0
        %317 = vmatpush1.bf16.msra.mxu0 0
        %318 = vmatprep.subr.bf16.mxu0 0
        %319 = vmatpush1.bf16.msra.mxu0 0
        %320 = vmatprep.subr.bf16.mxu0 0
        %321 = vmatpush1.bf16.msra.mxu0 0
        %322 = vmatprep.subr.bf16.mxu0 0
        %323 = vmatpush1.bf16.msra.mxu0 0
        %324 = vmatprep.mubr.bf16.mxu0 0
        %325 = vmatmul.mubr.bf16.gmra.mrb[0].mxu0 %v280
        %v326 = vpop.f32.mrb[0].mxu0
        %v327 = vadd.f32 0.0, %v326
        %v328 = vpop.f32.mrb[0].mxu0
        %v329 = vadd.f32 0.0, %v328
        %v330 = vpop.f32.mrb[0].mxu0
        %v331 = vpop.f32.mrb[0].mxu0
        %332 = vdwg.mxu0
        %333 = vmatprep.subr.bf16.mxu0 0
        %334 = vmatpush1.bf16.msra.mxu0 %v290
        %335 = vmatprep.subr.bf16.mxu0 0
        %336 = vmatpush1.bf16.msra.mxu0 0
        %337 = vmatprep.subr.bf16.mxu0 0
        %338 = vmatpush1.bf16.msra.mxu0 0
        %339 = vmatprep.subr.bf16.mxu0 0
        %340 = vmatpush1.bf16.msra.mxu0 0
        %341 = vmatprep.subr.bf16.mxu0 0
        %342 = vmatpush1.bf16.msra.mxu0 0
        %343 = vmatprep.subr.bf16.mxu0 0
        %344 = vmatpush1.bf16.msra.mxu0 0
        %345 = vmatprep.subr.bf16.mxu0 0
        %346 = vmatpush1.bf16.msra.mxu0 0
        %347 = vmatprep.subr.bf16.mxu0 0
        %348 = vmatpush1.bf16.msra.mxu0 0
        %349 = vmatprep.subr.bf16.mxu0 0
        %350 = vmatpush1.bf16.msra.mxu0 0
        %351 = vmatprep.subr.bf16.mxu0 0
        %352 = vmatpush1.bf16.msra.mxu0 0
        %353 = vmatprep.subr.bf16.mxu0 0
        %354 = vmatpush1.bf16.msra.mxu0 0
        %355 = vmatprep.subr.bf16.mxu0 0
        %356 = vmatpush1.bf16.msra.mxu0 0
        %357 = vmatprep.subr.bf16.mxu0 0
        %358 = vmatpush1.bf16.msra.mxu0 0
        %359 = vmatprep.subr.bf16.mxu0 0
        %360 = vmatpush1.bf16.msra.mxu0 0
        %361 = vmatprep.subr.bf16.mxu0 0
        %362 = vmatpush1.bf16.msra.mxu0 0
        %363 = vmatprep.subr.bf16.mxu0 0
        %364 = vmatpush1.bf16.msra.mxu0 0
        %365 = vmatprep.mubr.bf16.mxu0 0
        %366 = vmatmul.mubr.bf16.gmra.mrb[0].mxu0 %v280
        %v367 = vpop.f32.mrb[0].mxu0
        %v368 = vadd.f32 0.0, %v367
        %v369 = vpop.f32.mrb[0].mxu0
        %v370 = vpop.f32.mrb[0].mxu0
        %v371 = vpop.f32.mrb[0].mxu0
        %372 = vdwg.mxu0
        %373 = vrot.lane.b32.xlu0 %v262, 19
        %v374 = vpop.permute.xlu0 %373
        %375 = vrot.lane.b32.xlu0 %v263, 19
        %v376 = vpop.permute.xlu0 %375
        %377 = vrot.lane.b32.xlu0 %v264, 19
        %v378 = vpop.permute.xlu0 %377
        %379 = vrot.lane.b32.xlu0 %v265, 19
        %v380 = vpop.permute.xlu0 %379
        %vm381 = vcmask 154624
        %v382 = vsel %vm381, %v374, %v376
        %v383 = vsel %vm381, %v376, %v378
        %v384 = vsel %vm381, %v378, %v380
        %v386 = vsel %vm278, %v251, 0
        %v389 = vsel %vm282, %v382, 0
        %v392 = vsel %vm282, %v383, 0
        %v395 = vsel %vm282, %v384, 0
        %397 = vmatprep.subr.bf16.mxu0 %v392
        %398 = vmatpush1.bf16.msra.mxu0 %v389
        %399 = vmatprep.subr.bf16.mxu0 0
        %400 = vmatpush1.bf16.msra.mxu0 0
        %401 = vmatprep.subr.bf16.mxu0 0
        %402 = vmatpush1.bf16.msra.mxu0 0
        %403 = vmatprep.subr.bf16.mxu0 0
        %404 = vmatpush1.bf16.msra.mxu0 0
        %405 = vmatprep.subr.bf16.mxu0 0
        %406 = vmatpush1.bf16.msra.mxu0 0
        %407 = vmatprep.subr.bf16.mxu0 0
        %408 = vmatpush1.bf16.msra.mxu0 0
        %409 = vmatprep.subr.bf16.mxu0 0
        %410 = vmatpush1.bf16.msra.mxu0 0
        %411 = vmatprep.subr.bf16.mxu0 0
        %412 = vmatpush1.bf16.msra.mxu0 0
        %413 = vmatprep.subr.bf16.mxu0 0
        %414 = vmatpush1.bf16.msra.mxu0 0
        %415 = vmatprep.subr.bf16.mxu0 0
        %416 = vmatpush1.bf16.msra.mxu0 0
        %417 = vmatprep.subr.bf16.mxu0 0
        %418 = vmatpush1.bf16.msra.mxu0 0
        %419 = vmatprep.subr.bf16.mxu0 0
        %420 = vmatpush1.bf16.msra.mxu0 0
        %421 = vmatprep.subr.bf16.mxu0 0
        %422 = vmatpush1.bf16.msra.mxu0 0
        %423 = vmatprep.subr.bf16.mxu0 0
        %424 = vmatpush1.bf16.msra.mxu0 0
        %425 = vmatprep.subr.bf16.mxu0 0
        %426 = vmatpush1.bf16.msra.mxu0 0
        %427 = vmatprep.subr.bf16.mxu0 0
        %428 = vmatpush1.bf16.msra.mxu0 0
        %429 = vmatprep.mubr.bf16.mxu0 0
        %430 = vmatmul.mubr.bf16.gmra.mrb[0].mxu0 %v386
        %v431 = vpop.f32.mrb[0].mxu0
        %v432 = vadd.f32 %v327, %v431
        %v433 = vpop.f32.mrb[0].mxu0
        %v434 = vadd.f32 %v329, %v433
        %v435 = vpop.f32.mrb[0].mxu0
        %v436 = vpop.f32.mrb[0].mxu0
        %437 = vdwg.mxu0
        %438 = vmatprep.subr.bf16.mxu0 0
        %439 = vmatpush1.bf16.msra.mxu0 %v395
        %440 = vmatprep.subr.bf16.mxu0 0
        %441 = vmatpush1.bf16.msra.mxu0 0
        %442 = vmatprep.subr.bf16.mxu0 0
        %443 = vmatpush1.bf16.msra.mxu0 0
        %444 = vmatprep.subr.bf16.mxu0 0
        %445 = vmatpush1.bf16.msra.mxu0 0
        %446 = vmatprep.subr.bf16.mxu0 0
        %447 = vmatpush1.bf16.msra.mxu0 0
        %448 = vmatprep.subr.bf16.mxu0 0
        %449 = vmatpush1.bf16.msra.mxu0 0
        %450 = vmatprep.subr.bf16.mxu0 0
        %451 = vmatpush1.bf16.msra.mxu0 0
        %452 = vmatprep.subr.bf16.mxu0 0
        %453 = vmatpush1.bf16.msra.mxu0 0
        %454 = vmatprep.subr.bf16.mxu0 0
        %455 = vmatpush1.bf16.msra.mxu0 0
        %456 = vmatprep.subr.bf16.mxu0 0
        %457 = vmatpush1.bf16.msra.mxu0 0
        %458 = vmatprep.subr.bf16.mxu0 0
        %459 = vmatpush1.bf16.msra.mxu0 0
        %460 = vmatprep.subr.bf16.mxu0 0
        %461 = vmatpush1.bf16.msra.mxu0 0
        %462 = vmatprep.subr.bf16.mxu0 0
        %463 = vmatpush1.bf16.msra.mxu0 0
        %464 = vmatprep.subr.bf16.mxu0 0
        %465 = vmatpush1.bf16.msra.mxu0 0
        %466 = vmatprep.subr.bf16.mxu0 0
        %467 = vmatpush1.bf16.msra.mxu0 0
        %468 = vmatprep.subr.bf16.mxu0 0
        %469 = vmatpush1.bf16.msra.mxu0 0
        %470 = vmatprep.mubr.bf16.mxu0 0
        %471 = vmatmul.mubr.bf16.gmra.mrb[0].mxu0 %v386
        %v472 = vpop.f32.mrb[0].mxu0
        %v473 = vadd.f32 %v368, %v472
        %v474 = vpop.f32.mrb[0].mxu0
        %v475 = vpop.f32.mrb[0].mxu0
        %v476 = vpop.f32.mrb[0].mxu0
        %477 = vdwg.mxu0
        %s478 = scalar_lea.vmem %s2, 8
        %v479 = vld [vmem:[%s478] sm:$0xf]
        %480 = vrot.lane.b32.xlu0 %v262, 17
        %v481 = vpop.permute.xlu0 %480
        %482 = vrot.lane.b32.xlu0 %v263, 17
        %v483 = vpop.permute.xlu0 %482
        %484 = vrot.lane.b32.xlu0 %v264, 17
        %v485 = vpop.permute.xlu0 %484
        %486 = vrot.lane.b32.xlu0 %v265, 17
        %v487 = vpop.permute.xlu0 %486
        %vm488 = vcmask 138240
        %v489 = vsel %vm488, %v481, %v483
        %v490 = vsel %vm488, %v483, %v485
        %v491 = vsel %vm488, %v485, %v487
        %v493 = vsel %vm278, %v479, 0
        %v496 = vsel %vm282, %v489, 0
        %v499 = vsel %vm282, %v490, 0
        %v502 = vsel %vm282, %v491, 0
        %504 = vmatprep.subr.bf16.mxu0 %v499
        %505 = vmatpush1.bf16.msra.mxu0 %v496
        %506 = vmatprep.subr.bf16.mxu0 0
        %507 = vmatpush1.bf16.msra.mxu0 0
        %508 = vmatprep.subr.bf16.mxu0 0
        %509 = vmatpush1.bf16.msra.mxu0 0
        %510 = vmatprep.subr.bf16.mxu0 0
        %511 = vmatpush1.bf16.msra.mxu0 0
        %512 = vmatprep.subr.bf16.mxu0 0
        %513 = vmatpush1.bf16.msra.mxu0 0
        %514 = vmatprep.subr.bf16.mxu0 0
        %515 = vmatpush1.bf16.msra.mxu0 0
        %516 = vmatprep.subr.bf16.mxu0 0
        %517 = vmatpush1.bf16.msra.mxu0 0
        %518 = vmatprep.subr.bf16.mxu0 0
        %519 = vmatpush1.bf16.msra.mxu0 0
        %520 = vmatprep.subr.bf16.mxu0 0
        %521 = vmatpush1.bf16.msra.mxu0 0
        %522 = vmatprep.subr.bf16.mxu0 0
        %523 = vmatpush1.bf16.msra.mxu0 0
        %524 = vmatprep.subr.bf16.mxu0 0
        %525 = vmatpush1.bf16.msra.mxu0 0
        %526 = vmatprep.subr.bf16.mxu0 0
        %527 = vmatpush1.bf16.msra.mxu0 0
        %528 = vmatprep.subr.bf16.mxu0 0
        %529 = vmatpush1.bf16.msra.mxu0 0
        %530 = vmatprep.subr.bf16.mxu0 0
        %531 = vmatpush1.bf16.msra.mxu0 0
        %532 = vmatprep.subr.bf16.mxu0 0
        %533 = vmatpush1.bf16.msra.mxu0 0
        %534 = vmatprep.subr.bf16.mxu0 0
        %535 = vmatpush1.bf16.msra.mxu0 0
        %536 = vmatprep.mubr.bf16.mxu0 0
        %537 = vmatmul.mubr.bf16.gmra.mrb[0].mxu0 %v493
        %v538 = vpop.f32.mrb[0].mxu0
        %v539 = vadd.f32 0.0, %v538
        %v540 = vpop.f32.mrb[0].mxu0
        %v541 = vadd.f32 0.0, %v540
        %v542 = vpop.f32.mrb[0].mxu0
        %v543 = vpop.f32.mrb[0].mxu0
        %544 = vdwg.mxu0
        %545 = vmatprep.subr.bf16.mxu0 0
        %546 = vmatpush1.bf16.msra.mxu0 %v502
        %547 = vmatprep.subr.bf16.mxu0 0
        %548 = vmatpush1.bf16.msra.mxu0 0
        %549 = vmatprep.subr.bf16.mxu0 0
        %550 = vmatpush1.bf16.msra.mxu0 0
        %551 = vmatprep.subr.bf16.mxu0 0
        %552 = vmatpush1.bf16.msra.mxu0 0
        %553 = vmatprep.subr.bf16.mxu0 0
        %554 = vmatpush1.bf16.msra.mxu0 0
        %555 = vmatprep.subr.bf16.mxu0 0
        %556 = vmatpush1.bf16.msra.mxu0 0
        %557 = vmatprep.subr.bf16.mxu0 0
        %558 = vmatpush1.bf16.msra.mxu0 0
        %559 = vmatprep.subr.bf16.mxu0 0
        %560 = vmatpush1.bf16.msra.mxu0 0
        %561 = vmatprep.subr.bf16.mxu0 0
        %562 = vmatpush1.bf16.msra.mxu0 0
        %563 = vmatprep.subr.bf16.mxu0 0
        %564 = vmatpush1.bf16.msra.mxu0 0
        %565 = vmatprep.subr.bf16.mxu0 0
        %566 = vmatpush1.bf16.msra.mxu0 0
        %567 = vmatprep.subr.bf16.mxu0 0
        %568 = vmatpush1.bf16.msra.mxu0 0
        %569 = vmatprep.subr.bf16.mxu0 0
        %570 = vmatpush1.bf16.msra.mxu0 0
        %571 = vmatprep.subr.bf16.mxu0 0
        %572 = vmatpush1.bf16.msra.mxu0 0
        %573 = vmatprep.subr.bf16.mxu0 0
        %574 = vmatpush1.bf16.msra.mxu0 0
        %575 = vmatprep.subr.bf16.mxu0 0
        %576 = vmatpush1.bf16.msra.mxu0 0
        %577 = vmatprep.mubr.bf16.mxu0 0
        %578 = vmatmul.mubr.bf16.gmra.mrb[0].mxu0 %v493
        %v579 = vpop.f32.mrb[0].mxu0
        %v580 = vadd.f32 0.0, %v579
        %v581 = vpop.f32.mrb[0].mxu0
        %v582 = vpop.f32.mrb[0].mxu0
        %v583 = vpop.f32.mrb[0].mxu0
        %584 = vdwg.mxu0
        %v585 = vadd.f32 %v432, %v539
        %v586 = vadd.f32 %v434, %v541
        %v587 = vadd.f32 %v473, %v580
        %s588 = scalar_lea.vmem %s2, 12
        %v589 = vld [vmem:[%s588] sm:$0xf]
        %590 = vrot.lane.b32.xlu0 %v262, 1
        %v591 = vpop.permute.xlu0 %590
        %592 = vrot.lane.b32.xlu0 %v263, 1
        %v593 = vpop.permute.xlu0 %592
        %594 = vrot.lane.b32.xlu0 %v264, 1
        %v595 = vpop.permute.xlu0 %594
        %596 = vrot.lane.b32.xlu0 %v265, 1
        %v597 = vpop.permute.xlu0 %596
        %vm598 = vcmask 7168
        %v599 = vsel %vm598, %v591, %v593
        %v600 = vsel %vm598, %v593, %v595
        %v601 = vsel %vm598, %v595, %v597
        %v603 = vsel %vm278, %v589, 0
        %v606 = vsel %vm282, %v599, 0
        %v609 = vsel %vm282, %v600, 0
        %v612 = vsel %vm282, %v601, 0
        %614 = vmatprep.subr.bf16.mxu0 %v609
        %615 = vmatpush1.bf16.msra.mxu0 %v606
        %616 = vmatprep.subr.bf16.mxu0 0
        %617 = vmatpush1.bf16.msra.mxu0 0
        %618 = vmatprep.subr.bf16.mxu0 0
        %619 = vmatpush1.bf16.msra.mxu0 0
        %620 = vmatprep.subr.bf16.mxu0 0
        %621 = vmatpush1.bf16.msra.mxu0 0
        %622 = vmatprep.subr.bf16.mxu0 0
        %623 = vmatpush1.bf16.msra.mxu0 0
        %624 = vmatprep.subr.bf16.mxu0 0
        %625 = vmatpush1.bf16.msra.mxu0 0
        %626 = vmatprep.subr.bf16.mxu0 0
        %627 = vmatpush1.bf16.msra.mxu0 0
        %628 = vmatprep.subr.bf16.mxu0 0
        %629 = vmatpush1.bf16.msra.mxu0 0
        %630 = vmatprep.subr.bf16.mxu0 0
        %631 = vmatpush1.bf16.msra.mxu0 0
        %632 = vmatprep.subr.bf16.mxu0 0
        %633 = vmatpush1.bf16.msra.mxu0 0
        %634 = vmatprep.subr.bf16.mxu0 0
        %635 = vmatpush1.bf16.msra.mxu0 0
        %636 = vmatprep.subr.bf16.mxu0 0
        %637 = vmatpush1.bf16.msra.mxu0 0
        %638 = vmatprep.subr.bf16.mxu0 0
        %639 = vmatpush1.bf16.msra.mxu0 0
        %640 = vmatprep.subr.bf16.mxu0 0
        %641 = vmatpush1.bf16.msra.mxu0 0
        %642 = vmatprep.subr.bf16.mxu0 0
        %643 = vmatpush1.bf16.msra.mxu0 0
        %644 = vmatprep.subr.bf16.mxu0 0
        %645 = vmatpush1.bf16.msra.mxu0 0
        %646 = vmatprep.mubr.bf16.mxu0 0
        %647 = vmatmul.mubr.bf16.gmra.mrb[0].mxu0 %v603
        %v648 = vpop.f32.mrb[0].mxu0
        %v649 = vadd.f32 0.0, %v648
        %v650 = vpop.f32.mrb[0].mxu0
        %v651 = vadd.f32 0.0, %v650
        %v652 = vpop.f32.mrb[0].mxu0
        %v653 = vpop.f32.mrb[0].mxu0
        %654 = vdwg.mxu0
        %655 = vmatprep.subr.bf16.mxu0 0
        %656 = vmatpush1.bf16.msra.mxu0 %v612
        %657 = vmatprep.subr.bf16.mxu0 0
        %658 = vmatpush1.bf16.msra.mxu0 0
        %659 = vmatprep.subr.bf16.mxu0 0
        %660 = vmatpush1.bf16.msra.mxu0 0
        %661 = vmatprep.subr.bf16.mxu0 0
        %662 = vmatpush1.bf16.msra.mxu0 0
        %663 = vmatprep.subr.bf16.mxu0 0
        %664 = vmatpush1.bf16.msra.mxu0 0
        %665 = vmatprep.subr.bf16.mxu0 0
        %666 = vmatpush1.bf16.msra.mxu0 0
        %667 = vmatprep.subr.bf16.mxu0 0
        %668 = vmatpush1.bf16.msra.mxu0 0
        %669 = vmatprep.subr.bf16.mxu0 0
        %670 = vmatpush1.bf16.msra.mxu0 0
        %671 = vmatprep.subr.bf16.mxu0 0
        %672 = vmatpush1.bf16.msra.mxu0 0
        %673 = vmatprep.subr.bf16.mxu0 0
        %674 = vmatpush1.bf16.msra.mxu0 0
        %675 = vmatprep.subr.bf16.mxu0 0
        %676 = vmatpush1.bf16.msra.mxu0 0
        %677 = vmatprep.subr.bf16.mxu0 0
        %678 = vmatpush1.bf16.msra.mxu0 0
        %679 = vmatprep.subr.bf16.mxu0 0
        %680 = vmatpush1.bf16.msra.mxu0 0
        %681 = vmatprep.subr.bf16.mxu0 0
        %682 = vmatpush1.bf16.msra.mxu0 0
        %683 = vmatprep.subr.bf16.mxu0 0
        %684 = vmatpush1.bf16.msra.mxu0 0
        %685 = vmatprep.subr.bf16.mxu0 0
        %686 = vmatpush1.bf16.msra.mxu0 0
        %687 = vmatprep.mubr.bf16.mxu0 0
        %688 = vmatmul.mubr.bf16.gmra.mrb[0].mxu0 %v603
        %v689 = vpop.f32.mrb[0].mxu0
        %v690 = vadd.f32 0.0, %v689
        %v691 = vpop.f32.mrb[0].mxu0
        %v692 = vpop.f32.mrb[0].mxu0
        %v693 = vpop.f32.mrb[0].mxu0
        %694 = vdwg.mxu0
        %v695 = vadd.f32 %v585, %v649
        %v696 = vadd.f32 %v586, %v651
        %v697 = vadd.f32 %v587, %v690
        %s698 = scalar_lea.vmem %s2, 16
        %v699 = vld [vmem:[%s698] sm:$0xf]
        %v700 = vld [vmem:[%s249 + $0x4] sm:$0xff]
        %v701 = vld [vmem:[%s249 + $0xc] sm:$0xf]
        %v704 = vunpack.c.l.b16 %v700
        %v705 = vunpack.c.h.b16 %v700
        %v706 = vunpack.c.l.b16 %v701
        %v707 = vpack.c.b16 %v704, %v704
        %v708 = vpack.c.b16 %v705, %v705
        %v709 = vpack.c.b16 %v706, %v706
        %v711 = vsel %vm278, %v699, 0
        %v714 = vsel %vm282, %v707, 0
        %v717 = vsel %vm282, %v708, 0
        %v720 = vsel %vm282, %v709, 0
        %722 = vmatprep.subr.bf16.mxu0 %v717
        %723 = vmatpush1.bf16.msra.mxu0 %v714
        %724 = vmatprep.subr.bf16.mxu0 0
        %725 = vmatpush1.bf16.msra.mxu0 0
        %726 = vmatprep.subr.bf16.mxu0 0
        %727 = vmatpush1.bf16.msra.mxu0 0
        %728 = vmatprep.subr.bf16.mxu0 0
        %729 = vmatpush1.bf16.msra.mxu0 0
        %730 = vmatprep.subr.bf16.mxu0 0
        %731 = vmatpush1.bf16.msra.mxu0 0
        %732 = vmatprep.subr.bf16.mxu0 0
        %733 = vmatpush1.bf16.msra.mxu0 0
        %734 = vmatprep.subr.bf16.mxu0 0
        %735 = vmatpush1.bf16.msra.mxu0 0
        %736 = vmatprep.subr.bf16.mxu0 0
        %737 = vmatpush1.bf16.msra.mxu0 0
        %738 = vmatprep.subr.bf16.mxu0 0
        %739 = vmatpush1.bf16.msra.mxu0 0
        %740 = vmatprep.subr.bf16.mxu0 0
        %741 = vmatpush1.bf16.msra.mxu0 0
        %742 = vmatprep.subr.bf16.mxu0 0
        %743 = vmatpush1.bf16.msra.mxu0 0
        %744 = vmatprep.subr.bf16.mxu0 0
        %745 = vmatpush1.bf16.msra.mxu0 0
        %746 = vmatprep.subr.bf16.mxu0 0
        %747 = vmatpush1.bf16.msra.mxu0 0
        %748 = vmatprep.subr.bf16.mxu0 0
        %749 = vmatpush1.bf16.msra.mxu0 0
        %750 = vmatprep.subr.bf16.mxu0 0
        %751 = vmatpush1.bf16.msra.mxu0 0
        %752 = vmatprep.subr.bf16.mxu0 0
        %753 = vmatpush1.bf16.msra.mxu0 0
        %754 = vmatprep.mubr.bf16.mxu0 0
        %755 = vmatmul.mubr.bf16.gmra.mrb[0].mxu0 %v711
        %v756 = vpop.f32.mrb[0].mxu0
        %v757 = vadd.f32 0.0, %v756
        %v758 = vpop.f32.mrb[0].mxu0
        %v759 = vadd.f32 0.0, %v758
        %v760 = vpop.f32.mrb[0].mxu0
        %v761 = vpop.f32.mrb[0].mxu0
        %762 = vdwg.mxu0
        %763 = vmatprep.subr.bf16.mxu0 0
        %764 = vmatpush1.bf16.msra.mxu0 %v720
        %765 = vmatprep.subr.bf16.mxu0 0
        %766 = vmatpush1.bf16.msra.mxu0 0
        %767 = vmatprep.subr.bf16.mxu0 0
        %768 = vmatpush1.bf16.msra.mxu0 0
        %769 = vmatprep.subr.bf16.mxu0 0
        %770 = vmatpush1.bf16.msra.mxu0 0
        %771 = vmatprep.subr.bf16.mxu0 0
        %772 = vmatpush1.bf16.msra.mxu0 0
        %773 = vmatprep.subr.bf16.mxu0 0
        %774 = vmatpush1.bf16.msra.mxu0 0
        %775 = vmatprep.subr.bf16.mxu0 0
        %776 = vmatpush1.bf16.msra.mxu0 0
        %777 = vmatprep.subr.bf16.mxu0 0
        %778 = vmatpush1.bf16.msra.mxu0 0
        %779 = vmatprep.subr.bf16.mxu0 0
        %780 = vmatpush1.bf16.msra.mxu0 0
        %781 = vmatprep.subr.bf16.mxu0 0
        %782 = vmatpush1.bf16.msra.mxu0 0
        %783 = vmatprep.subr.bf16.mxu0 0
        %784 = vmatpush1.bf16.msra.mxu0 0
        %785 = vmatprep.subr.bf16.mxu0 0
        %786 = vmatpush1.bf16.msra.mxu0 0
        %787 = vmatprep.subr.bf16.mxu0 0
        %788 = vmatpush1.bf16.msra.mxu0 0
        %789 = vmatprep.subr.bf16.mxu0 0
        %790 = vmatpush1.bf16.msra.mxu0 0
        %791 = vmatprep.subr.bf16.mxu0 0
        %792 = vmatpush1.bf16.msra.mxu0 0
        %793 = vmatprep.subr.bf16.mxu0 0
        %794 = vmatpush1.bf16.msra.mxu0 0
        %795 = vmatprep.mubr.bf16.mxu0 0
        %796 = vmatmul.mubr.bf16.gmra.mrb[0].mxu0 %v711
        %v797 = vpop.f32.mrb[0].mxu0
        %v798 = vadd.f32 0.0, %v797
        %v799 = vpop.f32.mrb[0].mxu0
        %v800 = vpop.f32.mrb[0].mxu0
        %v801 = vpop.f32.mrb[0].mxu0
        %802 = vdwg.mxu0
        %v803 = vadd.f32 %v695, %v757
        %v804 = vadd.f32 %v696, %v759
        %v805 = vadd.f32 %v697, %v798
        %s806 = scalar_lea.vmem %s2, 20
        %v807 = vld [vmem:[%s806] sm:$0xf]
        %v808 = vld [vmem:[%s249 + $0x4] sm:$0xff]
        %v809 = vld [vmem:[%s249 + $0xc] sm:$0xff]
        %v812 = vunpack.c.l.b16 %v808
        %v813 = vunpack.c.h.b16 %v808
        %v814 = vunpack.c.l.b16 %v809
        %v815 = vunpack.c.h.b16 %v809
        %v816 = vpack.c.b16 %v812, %v812
        %v817 = vpack.c.b16 %v813, %v813
        %v818 = vpack.c.b16 %v814, %v814
        %v819 = vpack.c.b16 %v815, %v815
        %820 = vrot.lane.b32.xlu0 %v816, 127
        %v821 = vpop.permute.xlu0 %820
        %822 = vrot.lane.b32.xlu0 %v817, 127
        %v823 = vpop.permute.xlu0 %822
        %824 = vrot.lane.b32.xlu0 %v818, 127
        %v825 = vpop.permute.xlu0 %824
        %826 = vrot.lane.b32.xlu0 %v819, 127
        %v827 = vpop.permute.xlu0 %826
        %vm828 = vcmask 1039360
        %v829 = vsel %vm828, %v821, %v823
        %v830 = vsel %vm828, %v823, %v825
        %v831 = vsel %vm828, %v825, %v827
        %v833 = vsel %vm278, %v807, 0
        %v836 = vsel %vm282, %v829, 0
        %v839 = vsel %vm282, %v830, 0
        %v842 = vsel %vm282, %v831, 0
        %844 = vmatprep.subr.bf16.mxu0 %v839
        %845 = vmatpush1.bf16.msra.mxu0 %v836
        %846 = vmatprep.subr.bf16.mxu0 0
        %847 = vmatpush1.bf16.msra.mxu0 0
        %848 = vmatprep.subr.bf16.mxu0 0
        %849 = vmatpush1.bf16.msra.mxu0 0
        %850 = vmatprep.subr.bf16.mxu0 0
        %851 = vmatpush1.bf16.msra.mxu0 0
        %852 = vmatprep.subr.bf16.mxu0 0
        %853 = vmatpush1.bf16.msra.mxu0 0
        %854 = vmatprep.subr.bf16.mxu0 0
        %855 = vmatpush1.bf16.msra.mxu0 0
        %856 = vmatprep.subr.bf16.mxu0 0
        %857 = vmatpush1.bf16.msra.mxu0 0
        %858 = vmatprep.subr.bf16.mxu0 0
        %859 = vmatpush1.bf16.msra.mxu0 0
        %860 = vmatprep.subr.bf16.mxu0 0
        %861 = vmatpush1.bf16.msra.mxu0 0
        %862 = vmatprep.subr.bf16.mxu0 0
        %863 = vmatpush1.bf16.msra.mxu0 0
        %864 = vmatprep.subr.bf16.mxu0 0
        %865 = vmatpush1.bf16.msra.mxu0 0
        %866 = vmatprep.subr.bf16.mxu0 0
        %867 = vmatpush1.bf16.msra.mxu0 0
        %868 = vmatprep.subr.bf16.mxu0 0
        %869 = vmatpush1.bf16.msra.mxu0 0
        %870 = vmatprep.subr.bf16.mxu0 0
        %871 = vmatpush1.bf16.msra.mxu0 0
        %872 = vmatprep.subr.bf16.mxu0 0
        %873 = vmatpush1.bf16.msra.mxu0 0
        %874 = vmatprep.subr.bf16.mxu0 0
        %875 = vmatpush1.bf16.msra.mxu0 0
        %876 = vmatprep.mubr.bf16.mxu0 0
        %877 = vmatmul.mubr.bf16.gmra.mrb[0].mxu0 %v833
        %v878 = vpop.f32.mrb[0].mxu0
        %v879 = vadd.f32 0.0, %v878
        %v880 = vpop.f32.mrb[0].mxu0
        %v881 = vadd.f32 0.0, %v880
        %v882 = vpop.f32.mrb[0].mxu0
        %v883 = vpop.f32.mrb[0].mxu0
        %884 = vdwg.mxu0
        %885 = vmatprep.subr.bf16.mxu0 0
        %886 = vmatpush1.bf16.msra.mxu0 %v842
        %887 = vmatprep.subr.bf16.mxu0 0
        %888 = vmatpush1.bf16.msra.mxu0 0
        %889 = vmatprep.subr.bf16.mxu0 0
        %890 = vmatpush1.bf16.msra.mxu0 0
        %891 = vmatprep.subr.bf16.mxu0 0
        %892 = vmatpush1.bf16.msra.mxu0 0
        %893 = vmatprep.subr.bf16.mxu0 0
        %894 = vmatpush1.bf16.msra.mxu0 0
        %895 = vmatprep.subr.bf16.mxu0 0
        %896 = vmatpush1.bf16.msra.mxu0 0
        %897 = vmatprep.subr.bf16.mxu0 0
        %898 = vmatpush1.bf16.msra.mxu0 0
        %899 = vmatprep.subr.bf16.mxu0 0
        %900 = vmatpush1.bf16.msra.mxu0 0
        %901 = vmatprep.subr.bf16.mxu0 0
        %902 = vmatpush1.bf16.msra.mxu0 0
        %903 = vmatprep.subr.bf16.mxu0 0
        %904 = vmatpush1.bf16.msra.mxu0 0
        %905 = vmatprep.subr.bf16.mxu0 0
        %906 = vmatpush1.bf16.msra.mxu0 0
        %907 = vmatprep.subr.bf16.mxu0 0
        %908 = vmatpush1.bf16.msra.mxu0 0
        %909 = vmatprep.subr.bf16.mxu0 0
        %910 = vmatpush1.bf16.msra.mxu0 0
        %911 = vmatprep.subr.bf16.mxu0 0
        %912 = vmatpush1.bf16.msra.mxu0 0
        %913 = vmatprep.subr.bf16.mxu0 0
        %914 = vmatpush1.bf16.msra.mxu0 0
        %915 = vmatprep.subr.bf16.mxu0 0
        %916 = vmatpush1.bf16.msra.mxu0 0
        %917 = vmatprep.mubr.bf16.mxu0 0
        %918 = vmatmul.mubr.bf16.gmra.mrb[0].mxu0 %v833
        %v919 = vpop.f32.mrb[0].mxu0
        %v920 = vadd.f32 0.0, %v919
        %v921 = vpop.f32.mrb[0].mxu0
        %v922 = vpop.f32.mrb[0].mxu0
        %v923 = vpop.f32.mrb[0].mxu0
        %924 = vdwg.mxu0
        %v925 = vadd.f32 %v803, %v879
        %v926 = vadd.f32 %v804, %v881
        %v927 = vadd.f32 %v805, %v920
        %s928 = scalar_lea.vmem %s2, 24
        %v929 = vld [vmem:[%s928] sm:$0xf]
        %930 = vrot.lane.b32.xlu0 %v816, 111
        %v931 = vpop.permute.xlu0 %930
        %932 = vrot.lane.b32.xlu0 %v817, 111
        %v933 = vpop.permute.xlu0 %932
        %934 = vrot.lane.b32.xlu0 %v818, 111
        %v935 = vpop.permute.xlu0 %934
        %936 = vrot.lane.b32.xlu0 %v819, 111
        %v937 = vpop.permute.xlu0 %936
        %vm938 = vcmask 908288
        %v939 = vsel %vm938, %v931, %v933
        %v940 = vsel %vm938, %v933, %v935
        %v941 = vsel %vm938, %v935, %v937
        %v943 = vsel %vm278, %v929, 0
        %v946 = vsel %vm282, %v939, 0
        %v949 = vsel %vm282, %v940, 0
        %v952 = vsel %vm282, %v941, 0
        %954 = vmatprep.subr.bf16.mxu0 %v949
        %955 = vmatpush1.bf16.msra.mxu0 %v946
        %956 = vmatprep.subr.bf16.mxu0 0
        %957 = vmatpush1.bf16.msra.mxu0 0
        %958 = vmatprep.subr.bf16.mxu0 0
        %959 = vmatpush1.bf16.msra.mxu0 0
        %960 = vmatprep.subr.bf16.mxu0 0
        %961 = vmatpush1.bf16.msra.mxu0 0
        %962 = vmatprep.subr.bf16.mxu0 0
        %963 = vmatpush1.bf16.msra.mxu0 0
        %964 = vmatprep.subr.bf16.mxu0 0
        %965 = vmatpush1.bf16.msra.mxu0 0
        %966 = vmatprep.subr.bf16.mxu0 0
        %967 = vmatpush1.bf16.msra.mxu0 0
        %968 = vmatprep.subr.bf16.mxu0 0
        %969 = vmatpush1.bf16.msra.mxu0 0
        %970 = vmatprep.subr.bf16.mxu0 0
        %971 = vmatpush1.bf16.msra.mxu0 0
        %972 = vmatprep.subr.bf16.mxu0 0
        %973 = vmatpush1.bf16.msra.mxu0 0
        %974 = vmatprep.subr.bf16.mxu0 0
        %975 = vmatpush1.bf16.msra.mxu0 0
        %976 = vmatprep.subr.bf16.mxu0 0
        %977 = vmatpush1.bf16.msra.mxu0 0
        %978 = vmatprep.subr.bf16.mxu0 0
        %979 = vmatpush1.bf16.msra.mxu0 0
        %980 = vmatprep.subr.bf16.mxu0 0
        %981 = vmatpush1.bf16.msra.mxu0 0
        %982 = vmatprep.subr.bf16.mxu0 0
        %983 = vmatpush1.bf16.msra.mxu0 0
        %984 = vmatprep.subr.bf16.mxu0 0
        %985 = vmatpush1.bf16.msra.mxu0 0
        %986 = vmatprep.mubr.bf16.mxu0 0
        %987 = vmatmul.mubr.bf16.gmra.mrb[0].mxu0 %v943
        %v988 = vpop.f32.mrb[0].mxu0
        %v989 = vadd.f32 0.0, %v988
        %v990 = vpop.f32.mrb[0].mxu0
        %v991 = vadd.f32 0.0, %v990
        %v992 = vpop.f32.mrb[0].mxu0
        %v993 = vpop.f32.mrb[0].mxu0
        %994 = vdwg.mxu0
        %995 = vmatprep.subr.bf16.mxu0 0
        %996 = vmatpush1.bf16.msra.mxu0 %v952
        %997 = vmatprep.subr.bf16.mxu0 0
        %998 = vmatpush1.bf16.msra.mxu0 0
        %999 = vmatprep.subr.bf16.mxu0 0
        %1000 = vmatpush1.bf16.msra.mxu0 0
        %1001 = vmatprep.subr.bf16.mxu0 0
        %1002 = vmatpush1.bf16.msra.mxu0 0
        %1003 = vmatprep.subr.bf16.mxu0 0
        %1004 = vmatpush1.bf16.msra.mxu0 0
        %1005 = vmatprep.subr.bf16.mxu0 0
        %1006 = vmatpush1.bf16.msra.mxu0 0
        %1007 = vmatprep.subr.bf16.mxu0 0
        %1008 = vmatpush1.bf16.msra.mxu0 0
        %1009 = vmatprep.subr.bf16.mxu0 0
        %1010 = vmatpush1.bf16.msra.mxu0 0
        %1011 = vmatprep.subr.bf16.mxu0 0
        %1012 = vmatpush1.bf16.msra.mxu0 0
        %1013 = vmatprep.subr.bf16.mxu0 0
        %1014 = vmatpush1.bf16.msra.mxu0 0
        %1015 = vmatprep.subr.bf16.mxu0 0
        %1016 = vmatpush1.bf16.msra.mxu0 0
        %1017 = vmatprep.subr.bf16.mxu0 0
        %1018 = vmatpush1.bf16.msra.mxu0 0
        %1019 = vmatprep.subr.bf16.mxu0 0
        %1020 = vmatpush1.bf16.msra.mxu0 0
        %1021 = vmatprep.subr.bf16.mxu0 0
        %1022 = vmatpush1.bf16.msra.mxu0 0
        %1023 = vmatprep.subr.bf16.mxu0 0
        %1024 = vmatpush1.bf16.msra.mxu0 0
        %1025 = vmatprep.subr.bf16.mxu0 0
        %1026 = vmatpush1.bf16.msra.mxu0 0
        %1027 = vmatprep.mubr.bf16.mxu0 0
        %1028 = vmatmul.mubr.bf16.gmra.mrb[0].mxu0 %v943
        %v1029 = vpop.f32.mrb[0].mxu0
        %v1030 = vadd.f32 0.0, %v1029
        %v1031 = vpop.f32.mrb[0].mxu0
        %v1032 = vpop.f32.mrb[0].mxu0
        %v1033 = vpop.f32.mrb[0].mxu0
        %1034 = vdwg.mxu0
        %v1035 = vadd.f32 %v925, %v989
        %v1036 = vadd.f32 %v926, %v991
        %v1037 = vadd.f32 %v927, %v1030
        %s1038 = scalar_lea.vmem %s2, 28
        %v1039 = vld [vmem:[%s1038] sm:$0xf]
        %1040 = vrot.lane.b32.xlu0 %v816, 110
        %v1041 = vpop.permute.xlu0 %1040
        %1042 = vrot.lane.b32.xlu0 %v817, 110
        %v1043 = vpop.permute.xlu0 %1042
        %1044 = vrot.lane.b32.xlu0 %v818, 110
        %v1045 = vpop.permute.xlu0 %1044
        %1046 = vrot.lane.b32.xlu0 %v819, 110
        %v1047 = vpop.permute.xlu0 %1046
        %vm1048 = vcmask 900096
        %v1049 = vsel %vm1048, %v1041, %v1043
        %v1050 = vsel %vm1048, %v1043, %v1045
        %v1051 = vsel %vm1048, %v1045, %v1047
        %v1053 = vsel %vm278, %v1039, 0
        %v1056 = vsel %vm282, %v1049, 0
        %v1059 = vsel %vm282, %v1050, 0
        %v1062 = vsel %vm282, %v1051, 0
        %1064 = vmatprep.subr.bf16.mxu0 %v1059
        %1065 = vmatpush1.bf16.msra.mxu0 %v1056
        %1066 = vmatprep.subr.bf16.mxu0 0
        %1067 = vmatpush1.bf16.msra.mxu0 0
        %1068 = vmatprep.subr.bf16.mxu0 0
        %1069 = vmatpush1.bf16.msra.mxu0 0
        %1070 = vmatprep.subr.bf16.mxu0 0
        %1071 = vmatpush1.bf16.msra.mxu0 0
        %1072 = vmatprep.subr.bf16.mxu0 0
        %1073 = vmatpush1.bf16.msra.mxu0 0
        %1074 = vmatprep.subr.bf16.mxu0 0
        %1075 = vmatpush1.bf16.msra.mxu0 0
        %1076 = vmatprep.subr.bf16.mxu0 0
        %1077 = vmatpush1.bf16.msra.mxu0 0
        %1078 = vmatprep.subr.bf16.mxu0 0
        %1079 = vmatpush1.bf16.msra.mxu0 0
        %1080 = vmatprep.subr.bf16.mxu0 0
        %1081 = vmatpush1.bf16.msra.mxu0 0
        %1082 = vmatprep.subr.bf16.mxu0 0
        %1083 = vmatpush1.bf16.msra.mxu0 0
        %1084 = vmatprep.subr.bf16.mxu0 0
        %1085 = vmatpush1.bf16.msra.mxu0 0
        %1086 = vmatprep.subr.bf16.mxu0 0
        %1087 = vmatpush1.bf16.msra.mxu0 0
        %1088 = vmatprep.subr.bf16.mxu0 0
        %1089 = vmatpush1.bf16.msra.mxu0 0
        %1090 = vmatprep.subr.bf16.mxu0 0
        %1091 = vmatpush1.bf16.msra.mxu0 0
        %1092 = vmatprep.subr.bf16.mxu0 0
        %1093 = vmatpush1.bf16.msra.mxu0 0
        %1094 = vmatprep.subr.bf16.mxu0 0
        %1095 = vmatpush1.bf16.msra.mxu0 0
        %1096 = vmatprep.mubr.bf16.mxu0 0
        %1097 = vmatmul.mubr.bf16.gmra.mrb[0].mxu0 %v1053
        %v1098 = vpop.f32.mrb[0].mxu0
        %v1099 = vadd.f32 0.0, %v1098
        %v1100 = vpop.f32.mrb[0].mxu0
        %v1101 = vadd.f32 0.0, %v1100
        %v1102 = vpop.f32.mrb[0].mxu0
        %v1103 = vpop.f32.mrb[0].mxu0
        %1104 = vdwg.mxu0
        %1105 = vmatprep.subr.bf16.mxu0 0
        %1106 = vmatpush1.bf16.msra.mxu0 %v1062
        %1107 = vmatprep.subr.bf16.mxu0 0
        %1108 = vmatpush1.bf16.msra.mxu0 0
        %1109 = vmatprep.subr.bf16.mxu0 0
        %1110 = vmatpush1.bf16.msra.mxu0 0
        %1111 = vmatprep.subr.bf16.mxu0 0
        %1112 = vmatpush1.bf16.msra.mxu0 0
        %1113 = vmatprep.subr.bf16.mxu0 0
        %1114 = vmatpush1.bf16.msra.mxu0 0
        %1115 = vmatprep.subr.bf16.mxu0 0
        %1116 = vmatpush1.bf16.msra.mxu0 0
        %1117 = vmatprep.subr.bf16.mxu0 0
        %1118 = vmatpush1.bf16.msra.mxu0 0
        %1119 = vmatprep.subr.bf16.mxu0 0
        %1120 = vmatpush1.bf16.msra.mxu0 0
        %1121 = vmatprep.subr.bf16.mxu0 0
        %1122 = vmatpush1.bf16.msra.mxu0 0
        %1123 = vmatprep.subr.bf16.mxu0 0
        %1124 = vmatpush1.bf16.msra.mxu0 0
        %1125 = vmatprep.subr.bf16.mxu0 0
        %1126 = vmatpush1.bf16.msra.mxu0 0
        %1127 = vmatprep.subr.bf16.mxu0 0
        %1128 = vmatpush1.bf16.msra.mxu0 0
        %1129 = vmatprep.subr.bf16.mxu0 0
        %1130 = vmatpush1.bf16.msra.mxu0 0
        %1131 = vmatprep.subr.bf16.mxu0 0
        %1132 = vmatpush1.bf16.msra.mxu0 0
        %1133 = vmatprep.subr.bf16.mxu0 0
        %1134 = vmatpush1.bf16.msra.mxu0 0
        %1135 = vmatprep.subr.bf16.mxu0 0
        %1136 = vmatpush1.bf16.msra.mxu0 0
        %1137 = vmatprep.mubr.bf16.mxu0 0
        %1138 = vmatmul.mubr.bf16.gmra.mrb[0].mxu0 %v1053
        %v1139 = vpop.f32.mrb[0].mxu0
        %v1140 = vadd.f32 0.0, %v1139
        %v1141 = vpop.f32.mrb[0].mxu0
        %v1142 = vpop.f32.mrb[0].mxu0
        %v1143 = vpop.f32.mrb[0].mxu0
        %1144 = vdwg.mxu0
        %v1145 = vadd.f32 %v1035, %v1099
        %v1146 = vadd.f32 %v1036, %v1101
        %v1147 = vadd.f32 %v1037, %v1140
        %s1148 = scalar_lea.vmem %s2, 32
        %v1149 = vld [vmem:[%s1148] sm:$0xf]
        %1150 = vrot.lane.b32.xlu0 %v816, 109
        %v1151 = vpop.permute.xlu0 %1150
        %1152 = vrot.lane.b32.xlu0 %v817, 109
        %v1153 = vpop.permute.xlu0 %1152
        %1154 = vrot.lane.b32.xlu0 %v818, 109
        %v1155 = vpop.permute.xlu0 %1154
        %1156 = vrot.lane.b32.xlu0 %v819, 109
        %v1157 = vpop.permute.xlu0 %1156
        %vm1158 = vcmask 891904
        %v1159 = vsel %vm1158, %v1151, %v1153
        %v1160 = vsel %vm1158, %v1153, %v1155
        %v1161 = vsel %vm1158, %v1155, %v1157
        %v1163 = vsel %vm278, %v1149, 0
        %v1166 = vsel %vm282, %v1159, 0
        %v1169 = vsel %vm282, %v1160, 0
        %v1172 = vsel %vm282, %v1161, 0
        %1174 = vmatprep.subr.bf16.mxu0 %v1169
        %1175 = vmatpush1.bf16.msra.mxu0 %v1166
        %1176 = vmatprep.subr.bf16.mxu0 0
        %1177 = vmatpush1.bf16.msra.mxu0 0
        %1178 = vmatprep.subr.bf16.mxu0 0
        %1179 = vmatpush1.bf16.msra.mxu0 0
        %1180 = vmatprep.subr.bf16.mxu0 0
        %1181 = vmatpush1.bf16.msra.mxu0 0
        %1182 = vmatprep.subr.bf16.mxu0 0
        %1183 = vmatpush1.bf16.msra.mxu0 0
        %1184 = vmatprep.subr.bf16.mxu0 0
        %1185 = vmatpush1.bf16.msra.mxu0 0
        %1186 = vmatprep.subr.bf16.mxu0 0
        %1187 = vmatpush1.bf16.msra.mxu0 0
        %1188 = vmatprep.subr.bf16.mxu0 0
        %1189 = vmatpush1.bf16.msra.mxu0 0
        %1190 = vmatprep.subr.bf16.mxu0 0
        %1191 = vmatpush1.bf16.msra.mxu0 0
        %1192 = vmatprep.subr.bf16.mxu0 0
        %1193 = vmatpush1.bf16.msra.mxu0 0
        %1194 = vmatprep.subr.bf16.mxu0 0
        %1195 = vmatpush1.bf16.msra.mxu0 0
        %1196 = vmatprep.subr.bf16.mxu0 0
        %1197 = vmatpush1.bf16.msra.mxu0 0
        %1198 = vmatprep.subr.bf16.mxu0 0
        %1199 = vmatpush1.bf16.msra.mxu0 0
        %1200 = vmatprep.subr.bf16.mxu0 0
        %1201 = vmatpush1.bf16.msra.mxu0 0
        %1202 = vmatprep.subr.bf16.mxu0 0
        %1203 = vmatpush1.bf16.msra.mxu0 0
        %1204 = vmatprep.subr.bf16.mxu0 0
        %1205 = vmatpush1.bf16.msra.mxu0 0
        %1206 = vmatprep.mubr.bf16.mxu0 0
        %1207 = vmatmul.mubr.bf16.gmra.mrb[0].mxu0 %v1163
        %v1208 = vpop.f32.mrb[0].mxu0
        %v1209 = vadd.f32 0.0, %v1208
        %v1210 = vpop.f32.mrb[0].mxu0
        %v1211 = vadd.f32 0.0, %v1210
        %v1212 = vpop.f32.mrb[0].mxu0
        %v1213 = vpop.f32.mrb[0].mxu0
        %1214 = vdwg.mxu0
        %1215 = vmatprep.subr.bf16.mxu0 0
        %1216 = vmatpush1.bf16.msra.mxu0 %v1172
        %1217 = vmatprep.subr.bf16.mxu0 0
        %1218 = vmatpush1.bf16.msra.mxu0 0
        %1219 = vmatprep.subr.bf16.mxu0 0
        %1220 = vmatpush1.bf16.msra.mxu0 0
        %1221 = vmatprep.subr.bf16.mxu0 0
        %1222 = vmatpush1.bf16.msra.mxu0 0
        %1223 = vmatprep.subr.bf16.mxu0 0
        %1224 = vmatpush1.bf16.msra.mxu0 0
        %1225 = vmatprep.subr.bf16.mxu0 0
        %1226 = vmatpush1.bf16.msra.mxu0 0
        %1227 = vmatprep.subr.bf16.mxu0 0
        %1228 = vmatpush1.bf16.msra.mxu0 0
        %1229 = vmatprep.subr.bf16.mxu0 0
        %1230 = vmatpush1.bf16.msra.mxu0 0
        %1231 = vmatprep.subr.bf16.mxu0 0
        %1232 = vmatpush1.bf16.msra.mxu0 0
        %1233 = vmatprep.subr.bf16.mxu0 0
        %1234 = vmatpush1.bf16.msra.mxu0 0
        %1235 = vmatprep.subr.bf16.mxu0 0
        %1236 = vmatpush1.bf16.msra.mxu0 0
        %1237 = vmatprep.subr.bf16.mxu0 0
        %1238 = vmatpush1.bf16.msra.mxu0 0
        %1239 = vmatprep.subr.bf16.mxu0 0
        %1240 = vmatpush1.bf16.msra.mxu0 0
        %1241 = vmatprep.subr.bf16.mxu0 0
        %1242 = vmatpush1.bf16.msra.mxu0 0
        %1243 = vmatprep.subr.bf16.mxu0 0
        %1244 = vmatpush1.bf16.msra.mxu0 0
        %1245 = vmatprep.subr.bf16.mxu0 0
        %1246 = vmatpush1.bf16.msra.mxu0 0
        %1247 = vmatprep.mubr.bf16.mxu0 0
        %1248 = vmatmul.mubr.bf16.gmra.mrb[0].mxu0 %v1163
        %v1249 = vpop.f32.mrb[0].mxu0
        %v1250 = vadd.f32 0.0, %v1249
        %v1251 = vpop.f32.mrb[0].mxu0
        %v1252 = vpop.f32.mrb[0].mxu0
        %v1253 = vpop.f32.mrb[0].mxu0
        %1254 = vdwg.mxu0
        %v1255 = vadd.f32 %v1145, %v1209
        %v1256 = vadd.f32 %v1146, %v1211
        %v1257 = vadd.f32 %v1147, %v1250
        %v1258 = vld [vmem:[%s3] sm:$0xff]
        %1260 = vset.pattern.permute.xlu0 0
        %1261 = vperm.xlu0 %1260, %v1258
        %v1262 = vpop.permute.xlu0 %1261
        %v1264 = vadd.f32 %v1255, %v1262
        %v1265 = vadd.f32 %v1256, %v1262
        %v1266 = vadd.f32 %v1257, %v1262
        %v1267 = vmax.f32 %v1264, 0.0
        %v1268 = vmax.f32 %v1265, 0.0
        %v1269 = vmax.f32 %v1266, 0.0
        %v1270 = vld [vmem:[%s1] sm:$0x7]
        %v1272 = vlaneseq
        %v1273 = vshrl.u32 %v1272, 7
        %v1274 = vsub.s32 0, %v1273
        %v1275 = vrot.slane %v1270, %v1274
        %v1276 = vlaneseq
        %v1277 = vshrl.u32 %v1276, 7
        %v1278 = vsub.s32 1, %v1277
        %v1279 = vrot.slane %v1270, %v1278
        %v1280 = vlaneseq
        %v1281 = vshrl.u32 %v1280, 7
        %v1282 = vsub.s32 2, %v1281
        %v1283 = vrot.slane %v1270, %v1282
        %v1287 = vmul.f32 %v1267, %v1275
        %v1288 = vmul.f32 %v1268, %v1279
        %v1289 = vmul.f32 %v1269, %v1283
        %1290 = vst [vmem:[#allocation2] sm:$0xf] 0
        %1291 = vst [vmem:[#allocation2 + $0x10] sm:$0xf] 0
        %v1292 = vpack.c.bf16 %v1287, %v1287
        %v1293 = vpack.c.bf16 %v1288, %v1288
        %v1294 = vpack.c.bf16 %v1289, %v1289
        %v1298 = vunpack.c.l.b16 %v1292
        %v1299 = vunpack.c.l.b16 %v1293
        %v1300 = vunpack.c.l.b16 %v1294
        %v1301 = vpack.c.b16 %v1299, %v1298
        %v1302 = vpack.c.b16 %v1300, %v1300
        %1305 = vst [vmem:[#allocation2 + $0x4] sm:$0xff] %v1301
        %1306 = vst [vmem:[#allocation2 + $0xc] sm:$0xf] %v1302
        %v1307 = vld [vmem:[%s4] sm:$0xf]
        %v1308 = vld [vmem:[#allocation2] sm:$0xff]
        %v1309 = vld [vmem:[#allocation2 + $0x8] sm:$0xff]
        %s1310 = scalar_lea.vmem %s4, 4
        %v1311 = vld [vmem:[%s1310] sm:$0xf]
        %v1314 = vunpack.c.l.b16 %v1308
        %v1315 = vunpack.c.h.b16 %v1308
        %v1316 = vunpack.c.l.b16 %v1309
        %v1317 = vunpack.c.h.b16 %v1309
        %v1318 = vpack.c.b16 %v1314, %v1314
        %v1319 = vpack.c.b16 %v1315, %v1315
        %v1320 = vpack.c.b16 %v1316, %v1316
        %v1321 = vpack.c.b16 %v1317, %v1317
        %1322 = vrot.lane.b32.xlu0 %v1318, 18
        %v1323 = vpop.permute.xlu0 %1322
        %1324 = vrot.lane.b32.xlu0 %v1319, 18
        %v1325 = vpop.permute.xlu0 %1324
        %1326 = vrot.lane.b32.xlu0 %v1320, 18
        %v1327 = vpop.permute.xlu0 %1326
        %1328 = vrot.lane.b32.xlu0 %v1321, 18
        %v1329 = vpop.permute.xlu0 %1328
        %v1330 = vsel %vm274, %v1323, %v1325
        %v1331 = vsel %vm274, %v1325, %v1327
        %v1332 = vsel %vm274, %v1327, %v1329
        %v1334 = vsel %vm278, %v1311, 0
        %v1337 = vsel %vm282, %v1330, 0
        %v1340 = vsel %vm282, %v1331, 0
        %v1343 = vsel %vm282, %v1332, 0
        %1345 = vmatprep.subr.bf16.mxu0 %v1340
        %1346 = vmatpush1.bf16.msra.mxu0 %v1337
        %1347 = vmatprep.subr.bf16.mxu0 0
        %1348 = vmatpush1.bf16.msra.mxu0 0
        %1349 = vmatprep.subr.bf16.mxu0 0
        %1350 = vmatpush1.bf16.msra.mxu0 0
        %1351 = vmatprep.subr.bf16.mxu0 0
        %1352 = vmatpush1.bf16.msra.mxu0 0
        %1353 = vmatprep.subr.bf16.mxu0 0
        %1354 = vmatpush1.bf16.msra.mxu0 0
        %1355 = vmatprep.subr.bf16.mxu0 0
        %1356 = vmatpush1.bf16.msra.mxu0 0
        %1357 = vmatprep.subr.bf16.mxu0 0
        %1358 = vmatpush1.bf16.msra.mxu0 0
        %1359 = vmatprep.subr.bf16.mxu0 0
        %1360 = vmatpush1.bf16.msra.mxu0 0
        %1361 = vmatprep.subr.bf16.mxu0 0
        %1362 = vmatpush1.bf16.msra.mxu0 0
        %1363 = vmatprep.subr.bf16.mxu0 0
        %1364 = vmatpush1.bf16.msra.mxu0 0
        %1365 = vmatprep.subr.bf16.mxu0 0
        %1366 = vmatpush1.bf16.msra.mxu0 0
        %1367 = vmatprep.subr.bf16.mxu0 0
        %1368 = vmatpush1.bf16.msra.mxu0 0
        %1369 = vmatprep.subr.bf16.mxu0 0
        %1370 = vmatpush1.bf16.msra.mxu0 0
        %1371 = vmatprep.subr.bf16.mxu0 0
        %1372 = vmatpush1.bf16.msra.mxu0 0
        %1373 = vmatprep.subr.bf16.mxu0 0
        %1374 = vmatpush1.bf16.msra.mxu0 0
        %1375 = vmatprep.subr.bf16.mxu0 0
        %1376 = vmatpush1.bf16.msra.mxu0 0
        %1377 = vmatprep.mubr.bf16.mxu0 0
        %1378 = vmatmul.mubr.bf16.gmra.mrb[0].mxu0 %v1334
        %v1379 = vpop.f32.mrb[0].mxu0
        %v1380 = vadd.f32 0.0, %v1379
        %v1381 = vpop.f32.mrb[0].mxu0
        %v1382 = vadd.f32 0.0, %v1381
        %v1383 = vpop.f32.mrb[0].mxu0
        %v1384 = vpop.f32.mrb[0].mxu0
        %1385 = vdwg.mxu0
        %1386 = vmatprep.subr.bf16.mxu0 0
        %1387 = vmatpush1.bf16.msra.mxu0 %v1343
        %1388 = vmatprep.subr.bf16.mxu0 0
        %1389 = vmatpush1.bf16.msra.mxu0 0
        %1390 = vmatprep.subr.bf16.mxu0 0
        %1391 = vmatpush1.bf16.msra.mxu0 0
        %1392 = vmatprep.subr.bf16.mxu0 0
        %1393 = vmatpush1.bf16.msra.mxu0 0
        %1394 = vmatprep.subr.bf16.mxu0 0
        %1395 = vmatpush1.bf16.msra.mxu0 0
        %1396 = vmatprep.subr.bf16.mxu0 0
        %1397 = vmatpush1.bf16.msra.mxu0 0
        %1398 = vmatprep.subr.bf16.mxu0 0
        %1399 = vmatpush1.bf16.msra.mxu0 0
        %1400 = vmatprep.subr.bf16.mxu0 0
        %1401 = vmatpush1.bf16.msra.mxu0 0
        %1402 = vmatprep.subr.bf16.mxu0 0
        %1403 = vmatpush1.bf16.msra.mxu0 0
        %1404 = vmatprep.subr.bf16.mxu0 0
        %1405 = vmatpush1.bf16.msra.mxu0 0
        %1406 = vmatprep.subr.bf16.mxu0 0
        %1407 = vmatpush1.bf16.msra.mxu0 0
        %1408 = vmatprep.subr.bf16.mxu0 0
        %1409 = vmatpush1.bf16.msra.mxu0 0
        %1410 = vmatprep.subr.bf16.mxu0 0
        %1411 = vmatpush1.bf16.msra.mxu0 0
        %1412 = vmatprep.subr.bf16.mxu0 0
        %1413 = vmatpush1.bf16.msra.mxu0 0
        %1414 = vmatprep.subr.bf16.mxu0 0
        %1415 = vmatpush1.bf16.msra.mxu0 0
        %1416 = vmatprep.subr.bf16.mxu0 0
        %1417 = vmatpush1.bf16.msra.mxu0 0
        %1418 = vmatprep.mubr.bf16.mxu0 0
        %1419 = vmatmul.mubr.bf16.gmra.mrb[0].mxu0 %v1334
        %v1420 = vpop.f32.mrb[0].mxu0
        %v1421 = vadd.f32 0.0, %v1420
        %v1422 = vpop.f32.mrb[0].mxu0
        %v1423 = vpop.f32.mrb[0].mxu0
        %v1424 = vpop.f32.mrb[0].mxu0
        %1425 = vdwg.mxu0
        %1426 = vrot.lane.b32.xlu0 %v1318, 19
        %v1427 = vpop.permute.xlu0 %1426
        %1428 = vrot.lane.b32.xlu0 %v1319, 19
        %v1429 = vpop.permute.xlu0 %1428
        %1430 = vrot.lane.b32.xlu0 %v1320, 19
        %v1431 = vpop.permute.xlu0 %1430
        %1432 = vrot.lane.b32.xlu0 %v1321, 19
        %v1433 = vpop.permute.xlu0 %1432
        %v1434 = vsel %vm381, %v1427, %v1429
        %v1435 = vsel %vm381, %v1429, %v1431
        %v1436 = vsel %vm381, %v1431, %v1433
        %v1438 = vsel %vm278, %v1307, 0
        %v1441 = vsel %vm282, %v1434, 0
        %v1444 = vsel %vm282, %v1435, 0
        %v1447 = vsel %vm282, %v1436, 0
        %1449 = vmatprep.subr.bf16.mxu0 %v1444
        %1450 = vmatpush1.bf16.msra.mxu0 %v1441
        %1451 = vmatprep.subr.bf16.mxu0 0
        %1452 = vmatpush1.bf16.msra.mxu0 0
        %1453 = vmatprep.subr.bf16.mxu0 0
        %1454 = vmatpush1.bf16.msra.mxu0 0
        %1455 = vmatprep.subr.bf16.mxu0 0
        %1456 = vmatpush1.bf16.msra.mxu0 0
        %1457 = vmatprep.subr.bf16.mxu0 0
        %1458 = vmatpush1.bf16.msra.mxu0 0
        %1459 = vmatprep.subr.bf16.mxu0 0
        %1460 = vmatpush1.bf16.msra.mxu0 0
        %1461 = vmatprep.subr.bf16.mxu0 0
        %1462 = vmatpush1.bf16.msra.mxu0 0
        %1463 = vmatprep.subr.bf16.mxu0 0
        %1464 = vmatpush1.bf16.msra.mxu0 0
        %1465 = vmatprep.subr.bf16.mxu0 0
        %1466 = vmatpush1.bf16.msra.mxu0 0
        %1467 = vmatprep.subr.bf16.mxu0 0
        %1468 = vmatpush1.bf16.msra.mxu0 0
        %1469 = vmatprep.subr.bf16.mxu0 0
        %1470 = vmatpush1.bf16.msra.mxu0 0
        %1471 = vmatprep.subr.bf16.mxu0 0
        %1472 = vmatpush1.bf16.msra.mxu0 0
        %1473 = vmatprep.subr.bf16.mxu0 0
        %1474 = vmatpush1.bf16.msra.mxu0 0
        %1475 = vmatprep.subr.bf16.mxu0 0
        %1476 = vmatpush1.bf16.msra.mxu0 0
        %1477 = vmatprep.subr.bf16.mxu0 0
        %1478 = vmatpush1.bf16.msra.mxu0 0
        %1479 = vmatprep.subr.bf16.mxu0 0
        %1480 = vmatpush1.bf16.msra.mxu0 0
        %1481 = vmatprep.mubr.bf16.mxu0 0
        %1482 = vmatmul.mubr.bf16.gmra.mrb[0].mxu0 %v1438
        %v1483 = vpop.f32.mrb[0].mxu0
        %v1484 = vadd.f32 %v1380, %v1483
        %v1485 = vpop.f32.mrb[0].mxu0
        %v1486 = vadd.f32 %v1382, %v1485
        %v1487 = vpop.f32.mrb[0].mxu0
        %v1488 = vpop.f32.mrb[0].mxu0
        %1489 = vdwg.mxu0
        %1490 = vmatprep.subr.bf16.mxu0 0
        %1491 = vmatpush1.bf16.msra.mxu0 %v1447
        %1492 = vmatprep.subr.bf16.mxu0 0
        %1493 = vmatpush1.bf16.msra.mxu0 0
        %1494 = vmatprep.subr.bf16.mxu0 0
        %1495 = vmatpush1.bf16.msra.mxu0 0
        %1496 = vmatprep.subr.bf16.mxu0 0
        %1497 = vmatpush1.bf16.msra.mxu0 0
        %1498 = vmatprep.subr.bf16.mxu0 0
        %1499 = vmatpush1.bf16.msra.mxu0 0
        %1500 = vmatprep.subr.bf16.mxu0 0
        %1501 = vmatpush1.bf16.msra.mxu0 0
        %1502 = vmatprep.subr.bf16.mxu0 0
        %1503 = vmatpush1.bf16.msra.mxu0 0
        %1504 = vmatprep.subr.bf16.mxu0 0
        %1505 = vmatpush1.bf16.msra.mxu0 0
        %1506 = vmatprep.subr.bf16.mxu0 0
        %1507 = vmatpush1.bf16.msra.mxu0 0
        %1508 = vmatprep.subr.bf16.mxu0 0
        %1509 = vmatpush1.bf16.msra.mxu0 0
        %1510 = vmatprep.subr.bf16.mxu0 0
        %1511 = vmatpush1.bf16.msra.mxu0 0
        %1512 = vmatprep.subr.bf16.mxu0 0
        %1513 = vmatpush1.bf16.msra.mxu0 0
        %1514 = vmatprep.subr.bf16.mxu0 0
        %1515 = vmatpush1.bf16.msra.mxu0 0
        %1516 = vmatprep.subr.bf16.mxu0 0
        %1517 = vmatpush1.bf16.msra.mxu0 0
        %1518 = vmatprep.subr.bf16.mxu0 0
        %1519 = vmatpush1.bf16.msra.mxu0 0
        %1520 = vmatprep.subr.bf16.mxu0 0
        %1521 = vmatpush1.bf16.msra.mxu0 0
        %1522 = vmatprep.mubr.bf16.mxu0 0
        %1523 = vmatmul.mubr.bf16.gmra.mrb[0].mxu0 %v1438
        %v1524 = vpop.f32.mrb[0].mxu0
        %v1525 = vadd.f32 %v1421, %v1524
        %v1526 = vpop.f32.mrb[0].mxu0
        %v1527 = vpop.f32.mrb[0].mxu0
        %v1528 = vpop.f32.mrb[0].mxu0
        %1529 = vdwg.mxu0
        %s1530 = scalar_lea.vmem %s4, 8
        %v1531 = vld [vmem:[%s1530] sm:$0xf]
        %1532 = vrot.lane.b32.xlu0 %v1318, 17
        %v1533 = vpop.permute.xlu0 %1532
        %1534 = vrot.lane.b32.xlu0 %v1319, 17
        %v1535 = vpop.permute.xlu0 %1534
        %1536 = vrot.lane.b32.xlu0 %v1320, 17
        %v1537 = vpop.permute.xlu0 %1536
        %1538 = vrot.lane.b32.xlu0 %v1321, 17
        %v1539 = vpop.permute.xlu0 %1538
        %v1540 = vsel %vm488, %v1533, %v1535
        %v1541 = vsel %vm488, %v1535, %v1537
        %v1542 = vsel %vm488, %v1537, %v1539
        %v1544 = vsel %vm278, %v1531, 0
        %v1547 = vsel %vm282, %v1540, 0
        %v1550 = vsel %vm282, %v1541, 0
        %v1553 = vsel %vm282, %v1542, 0
        %1555 = vmatprep.subr.bf16.mxu0 %v1550
        %1556 = vmatpush1.bf16.msra.mxu0 %v1547
        %1557 = vmatprep.subr.bf16.mxu0 0
        %1558 = vmatpush1.bf16.msra.mxu0 0
        %1559 = vmatprep.subr.bf16.mxu0 0
        %1560 = vmatpush1.bf16.msra.mxu0 0
        %1561 = vmatprep.subr.bf16.mxu0 0
        %1562 = vmatpush1.bf16.msra.mxu0 0
        %1563 = vmatprep.subr.bf16.mxu0 0
        %1564 = vmatpush1.bf16.msra.mxu0 0
        %1565 = vmatprep.subr.bf16.mxu0 0
        %1566 = vmatpush1.bf16.msra.mxu0 0
        %1567 = vmatprep.subr.bf16.mxu0 0
        %1568 = vmatpush1.bf16.msra.mxu0 0
        %1569 = vmatprep.subr.bf16.mxu0 0
        %1570 = vmatpush1.bf16.msra.mxu0 0
        %1571 = vmatprep.subr.bf16.mxu0 0
        %1572 = vmatpush1.bf16.msra.mxu0 0
        %1573 = vmatprep.subr.bf16.mxu0 0
        %1574 = vmatpush1.bf16.msra.mxu0 0
        %1575 = vmatprep.subr.bf16.mxu0 0
        %1576 = vmatpush1.bf16.msra.mxu0 0
        %1577 = vmatprep.subr.bf16.mxu0 0
        %1578 = vmatpush1.bf16.msra.mxu0 0
        %1579 = vmatprep.subr.bf16.mxu0 0
        %1580 = vmatpush1.bf16.msra.mxu0 0
        %1581 = vmatprep.subr.bf16.mxu0 0
        %1582 = vmatpush1.bf16.msra.mxu0 0
        %1583 = vmatprep.subr.bf16.mxu0 0
        %1584 = vmatpush1.bf16.msra.mxu0 0
        %1585 = vmatprep.subr.bf16.mxu0 0
        %1586 = vmatpush1.bf16.msra.mxu0 0
        %1587 = vmatprep.mubr.bf16.mxu0 0
        %1588 = vmatmul.mubr.bf16.gmra.mrb[0].mxu0 %v1544
        %v1589 = vpop.f32.mrb[0].mxu0
        %v1590 = vadd.f32 0.0, %v1589
        %v1591 = vpop.f32.mrb[0].mxu0
        %v1592 = vadd.f32 0.0, %v1591
        %v1593 = vpop.f32.mrb[0].mxu0
        %v1594 = vpop.f32.mrb[0].mxu0
        %1595 = vdwg.mxu0
        %1596 = vmatprep.subr.bf16.mxu0 0
        %1597 = vmatpush1.bf16.msra.mxu0 %v1553
        %1598 = vmatprep.subr.bf16.mxu0 0
        %1599 = vmatpush1.bf16.msra.mxu0 0
        %1600 = vmatprep.subr.bf16.mxu0 0
        %1601 = vmatpush1.bf16.msra.mxu0 0
        %1602 = vmatprep.subr.bf16.mxu0 0
        %1603 = vmatpush1.bf16.msra.mxu0 0
        %1604 = vmatprep.subr.bf16.mxu0 0
        %1605 = vmatpush1.bf16.msra.mxu0 0
        %1606 = vmatprep.subr.bf16.mxu0 0
        %1607 = vmatpush1.bf16.msra.mxu0 0
        %1608 = vmatprep.subr.bf16.mxu0 0
        %1609 = vmatpush1.bf16.msra.mxu0 0
        %1610 = vmatprep.subr.bf16.mxu0 0
        %1611 = vmatpush1.bf16.msra.mxu0 0
        %1612 = vmatprep.subr.bf16.mxu0 0
        %1613 = vmatpush1.bf16.msra.mxu0 0
        %1614 = vmatprep.subr.bf16.mxu0 0
        %1615 = vmatpush1.bf16.msra.mxu0 0
        %1616 = vmatprep.subr.bf16.mxu0 0
        %1617 = vmatpush1.bf16.msra.mxu0 0
        %1618 = vmatprep.subr.bf16.mxu0 0
        %1619 = vmatpush1.bf16.msra.mxu0 0
        %1620 = vmatprep.subr.bf16.mxu0 0
        %1621 = vmatpush1.bf16.msra.mxu0 0
        %1622 = vmatprep.subr.bf16.mxu0 0
        %1623 = vmatpush1.bf16.msra.mxu0 0
        %1624 = vmatprep.subr.bf16.mxu0 0
        %1625 = vmatpush1.bf16.msra.mxu0 0
        %1626 = vmatprep.subr.bf16.mxu0 0
        %1627 = vmatpush1.bf16.msra.mxu0 0
        %1628 = vmatprep.mubr.bf16.mxu0 0
        %1629 = vmatmul.mubr.bf16.gmra.mrb[0].mxu0 %v1544
        %v1630 = vpop.f32.mrb[0].mxu0
        %v1631 = vadd.f32 0.0, %v1630
        %v1632 = vpop.f32.mrb[0].mxu0
        %v1633 = vpop.f32.mrb[0].mxu0
        %v1634 = vpop.f32.mrb[0].mxu0
        %1635 = vdwg.mxu0
        %v1636 = vadd.f32 %v1484, %v1590
        %v1637 = vadd.f32 %v1486, %v1592
        %v1638 = vadd.f32 %v1525, %v1631
        %s1639 = scalar_lea.vmem %s4, 12
        %v1640 = vld [vmem:[%s1639] sm:$0xf]
        %1641 = vrot.lane.b32.xlu0 %v1318, 1
        %v1642 = vpop.permute.xlu0 %1641
        %1643 = vrot.lane.b32.xlu0 %v1319, 1
        %v1644 = vpop.permute.xlu0 %1643
        %1645 = vrot.lane.b32.xlu0 %v1320, 1
        %v1646 = vpop.permute.xlu0 %1645
        %1647 = vrot.lane.b32.xlu0 %v1321, 1
        %v1648 = vpop.permute.xlu0 %1647
        %v1649 = vsel %vm598, %v1642, %v1644
        %v1650 = vsel %vm598, %v1644, %v1646
        %v1651 = vsel %vm598, %v1646, %v1648
        %v1653 = vsel %vm278, %v1640, 0
        %v1656 = vsel %vm282, %v1649, 0
        %v1659 = vsel %vm282, %v1650, 0
        %v1662 = vsel %vm282, %v1651, 0
        %1664 = vmatprep.subr.bf16.mxu0 %v1659
        %1665 = vmatpush1.bf16.msra.mxu0 %v1656
        %1666 = vmatprep.subr.bf16.mxu0 0
        %1667 = vmatpush1.bf16.msra.mxu0 0
        %1668 = vmatprep.subr.bf16.mxu0 0
        %1669 = vmatpush1.bf16.msra.mxu0 0
        %1670 = vmatprep.subr.bf16.mxu0 0
        %1671 = vmatpush1.bf16.msra.mxu0 0
        %1672 = vmatprep.subr.bf16.mxu0 0
        %1673 = vmatpush1.bf16.msra.mxu0 0
        %1674 = vmatprep.subr.bf16.mxu0 0
        %1675 = vmatpush1.bf16.msra.mxu0 0
        %1676 = vmatprep.subr.bf16.mxu0 0
        %1677 = vmatpush1.bf16.msra.mxu0 0
        %1678 = vmatprep.subr.bf16.mxu0 0
        %1679 = vmatpush1.bf16.msra.mxu0 0
        %1680 = vmatprep.subr.bf16.mxu0 0
        %1681 = vmatpush1.bf16.msra.mxu0 0
        %1682 = vmatprep.subr.bf16.mxu0 0
        %1683 = vmatpush1.bf16.msra.mxu0 0
        %1684 = vmatprep.subr.bf16.mxu0 0
        %1685 = vmatpush1.bf16.msra.mxu0 0
        %1686 = vmatprep.subr.bf16.mxu0 0
        %1687 = vmatpush1.bf16.msra.mxu0 0
        %1688 = vmatprep.subr.bf16.mxu0 0
        %1689 = vmatpush1.bf16.msra.mxu0 0
        %1690 = vmatprep.subr.bf16.mxu0 0
        %1691 = vmatpush1.bf16.msra.mxu0 0
        %1692 = vmatprep.subr.bf16.mxu0 0
        %1693 = vmatpush1.bf16.msra.mxu0 0
        %1694 = vmatprep.subr.bf16.mxu0 0
        %1695 = vmatpush1.bf16.msra.mxu0 0
        %1696 = vmatprep.mubr.bf16.mxu0 0
        %1697 = vmatmul.mubr.bf16.gmra.mrb[0].mxu0 %v1653
        %v1698 = vpop.f32.mrb[0].mxu0
        %v1699 = vadd.f32 0.0, %v1698
        %v1700 = vpop.f32.mrb[0].mxu0
        %v1701 = vadd.f32 0.0, %v1700
        %v1702 = vpop.f32.mrb[0].mxu0
        %v1703 = vpop.f32.mrb[0].mxu0
        %1704 = vdwg.mxu0
        %1705 = vmatprep.subr.bf16.mxu0 0
        %1706 = vmatpush1.bf16.msra.mxu0 %v1662
        %1707 = vmatprep.subr.bf16.mxu0 0
        %1708 = vmatpush1.bf16.msra.mxu0 0
        %1709 = vmatprep.subr.bf16.mxu0 0
        %1710 = vmatpush1.bf16.msra.mxu0 0
        %1711 = vmatprep.subr.bf16.mxu0 0
        %1712 = vmatpush1.bf16.msra.mxu0 0
        %1713 = vmatprep.subr.bf16.mxu0 0
        %1714 = vmatpush1.bf16.msra.mxu0 0
        %1715 = vmatprep.subr.bf16.mxu0 0
        %1716 = vmatpush1.bf16.msra.mxu0 0
        %1717 = vmatprep.subr.bf16.mxu0 0
        %1718 = vmatpush1.bf16.msra.mxu0 0
        %1719 = vmatprep.subr.bf16.mxu0 0
        %1720 = vmatpush1.bf16.msra.mxu0 0
        %1721 = vmatprep.subr.bf16.mxu0 0
        %1722 = vmatpush1.bf16.msra.mxu0 0
        %1723 = vmatprep.subr.bf16.mxu0 0
        %1724 = vmatpush1.bf16.msra.mxu0 0
        %1725 = vmatprep.subr.bf16.mxu0 0
        %1726 = vmatpush1.bf16.msra.mxu0 0
        %1727 = vmatprep.subr.bf16.mxu0 0
        %1728 = vmatpush1.bf16.msra.mxu0 0
        %1729 = vmatprep.subr.bf16.mxu0 0
        %1730 = vmatpush1.bf16.msra.mxu0 0
        %1731 = vmatprep.subr.bf16.mxu0 0
        %1732 = vmatpush1.bf16.msra.mxu0 0
        %1733 = vmatprep.subr.bf16.mxu0 0
        %1734 = vmatpush1.bf16.msra.mxu0 0
        %1735 = vmatprep.subr.bf16.mxu0 0
        %1736 = vmatpush1.bf16.msra.mxu0 0
        %1737 = vmatprep.mubr.bf16.mxu0 0
        %1738 = vmatmul.mubr.bf16.gmra.mrb[0].mxu0 %v1653
        %v1739 = vpop.f32.mrb[0].mxu0
        %v1740 = vadd.f32 0.0, %v1739
        %v1741 = vpop.f32.mrb[0].mxu0
        %v1742 = vpop.f32.mrb[0].mxu0
        %v1743 = vpop.f32.mrb[0].mxu0
        %1744 = vdwg.mxu0
        %v1745 = vadd.f32 %v1636, %v1699
        %v1746 = vadd.f32 %v1637, %v1701
        %v1747 = vadd.f32 %v1638, %v1740
        %s1748 = scalar_lea.vmem %s4, 16
        %v1749 = vld [vmem:[%s1748] sm:$0xf]
        %v1750 = vld [vmem:[#allocation2 + $0x4] sm:$0xff]
        %v1751 = vld [vmem:[#allocation2 + $0xc] sm:$0xf]
        %v1754 = vunpack.c.l.b16 %v1750
        %v1755 = vunpack.c.h.b16 %v1750
        %v1756 = vunpack.c.l.b16 %v1751
        %v1757 = vpack.c.b16 %v1754, %v1754
        %v1758 = vpack.c.b16 %v1755, %v1755
        %v1759 = vpack.c.b16 %v1756, %v1756
        %v1761 = vsel %vm278, %v1749, 0
        %v1764 = vsel %vm282, %v1757, 0
        %v1767 = vsel %vm282, %v1758, 0
        %v1770 = vsel %vm282, %v1759, 0
        %1772 = vmatprep.subr.bf16.mxu0 %v1767
        %1773 = vmatpush1.bf16.msra.mxu0 %v1764
        %1774 = vmatprep.subr.bf16.mxu0 0
        %1775 = vmatpush1.bf16.msra.mxu0 0
        %1776 = vmatprep.subr.bf16.mxu0 0
        %1777 = vmatpush1.bf16.msra.mxu0 0
        %1778 = vmatprep.subr.bf16.mxu0 0
        %1779 = vmatpush1.bf16.msra.mxu0 0
        %1780 = vmatprep.subr.bf16.mxu0 0
        %1781 = vmatpush1.bf16.msra.mxu0 0
        %1782 = vmatprep.subr.bf16.mxu0 0
        %1783 = vmatpush1.bf16.msra.mxu0 0
        %1784 = vmatprep.subr.bf16.mxu0 0
        %1785 = vmatpush1.bf16.msra.mxu0 0
        %1786 = vmatprep.subr.bf16.mxu0 0
        %1787 = vmatpush1.bf16.msra.mxu0 0
        %1788 = vmatprep.subr.bf16.mxu0 0
        %1789 = vmatpush1.bf16.msra.mxu0 0
        %1790 = vmatprep.subr.bf16.mxu0 0
        %1791 = vmatpush1.bf16.msra.mxu0 0
        %1792 = vmatprep.subr.bf16.mxu0 0
        %1793 = vmatpush1.bf16.msra.mxu0 0
        %1794 = vmatprep.subr.bf16.mxu0 0
        %1795 = vmatpush1.bf16.msra.mxu0 0
        %1796 = vmatprep.subr.bf16.mxu0 0
        %1797 = vmatpush1.bf16.msra.mxu0 0
        %1798 = vmatprep.subr.bf16.mxu0 0
        %1799 = vmatpush1.bf16.msra.mxu0 0
        %1800 = vmatprep.subr.bf16.mxu0 0
        %1801 = vmatpush1.bf16.msra.mxu0 0
        %1802 = vmatprep.subr.bf16.mxu0 0
        %1803 = vmatpush1.bf16.msra.mxu0 0
        %1804 = vmatprep.mubr.bf16.mxu0 0
        %1805 = vmatmul.mubr.bf16.gmra.mrb[0].mxu0 %v1761
        %v1806 = vpop.f32.mrb[0].mxu0
        %v1807 = vadd.f32 0.0, %v1806
        %v1808 = vpop.f32.mrb[0].mxu0
        %v1809 = vadd.f32 0.0, %v1808
        %v1810 = vpop.f32.mrb[0].mxu0
        %v1811 = vpop.f32.mrb[0].mxu0
        %1812 = vdwg.mxu0
        %1813 = vmatprep.subr.bf16.mxu0 0
        %1814 = vmatpush1.bf16.msra.mxu0 %v1770
        %1815 = vmatprep.subr.bf16.mxu0 0
        %1816 = vmatpush1.bf16.msra.mxu0 0
        %1817 = vmatprep.subr.bf16.mxu0 0
        %1818 = vmatpush1.bf16.msra.mxu0 0
        %1819 = vmatprep.subr.bf16.mxu0 0
        %1820 = vmatpush1.bf16.msra.mxu0 0
        %1821 = vmatprep.subr.bf16.mxu0 0
        %1822 = vmatpush1.bf16.msra.mxu0 0
        %1823 = vmatprep.subr.bf16.mxu0 0
        %1824 = vmatpush1.bf16.msra.mxu0 0
        %1825 = vmatprep.subr.bf16.mxu0 0
        %1826 = vmatpush1.bf16.msra.mxu0 0
        %1827 = vmatprep.subr.bf16.mxu0 0
        %1828 = vmatpush1.bf16.msra.mxu0 0
        %1829 = vmatprep.subr.bf16.mxu0 0
        %1830 = vmatpush1.bf16.msra.mxu0 0
        %1831 = vmatprep.subr.bf16.mxu0 0
        %1832 = vmatpush1.bf16.msra.mxu0 0
        %1833 = vmatprep.subr.bf16.mxu0 0
        %1834 = vmatpush1.bf16.msra.mxu0 0
        %1835 = vmatprep.subr.bf16.mxu0 0
        %1836 = vmatpush1.bf16.msra.mxu0 0
        %1837 = vmatprep.subr.bf16.mxu0 0
        %1838 = vmatpush1.bf16.msra.mxu0 0
        %1839 = vmatprep.subr.bf16.mxu0 0
        %1840 = vmatpush1.bf16.msra.mxu0 0
        %1841 = vmatprep.subr.bf16.mxu0 0
        %1842 = vmatpush1.bf16.msra.mxu0 0
        %1843 = vmatprep.subr.bf16.mxu0 0
        %1844 = vmatpush1.bf16.msra.mxu0 0
        %1845 = vmatprep.mubr.bf16.mxu0 0
        %1846 = vmatmul.mubr.bf16.gmra.mrb[0].mxu0 %v1761
        %v1847 = vpop.f32.mrb[0].mxu0
        %v1848 = vadd.f32 0.0, %v1847
        %v1849 = vpop.f32.mrb[0].mxu0
        %v1850 = vpop.f32.mrb[0].mxu0
        %v1851 = vpop.f32.mrb[0].mxu0
        %1852 = vdwg.mxu0
        %v1853 = vadd.f32 %v1745, %v1807
        %v1854 = vadd.f32 %v1746, %v1809
        %v1855 = vadd.f32 %v1747, %v1848
        %s1856 = scalar_lea.vmem %s4, 20
        %v1857 = vld [vmem:[%s1856] sm:$0xf]
        %v1858 = vld [vmem:[#allocation2 + $0x4] sm:$0xff]
        %v1859 = vld [vmem:[#allocation2 + $0xc] sm:$0xff]
        %v1862 = vunpack.c.l.b16 %v1858
        %v1863 = vunpack.c.h.b16 %v1858
        %v1864 = vunpack.c.l.b16 %v1859
        %v1865 = vunpack.c.h.b16 %v1859
        %v1866 = vpack.c.b16 %v1862, %v1862
        %v1867 = vpack.c.b16 %v1863, %v1863
        %v1868 = vpack.c.b16 %v1864, %v1864
        %v1869 = vpack.c.b16 %v1865, %v1865
        %1870 = vrot.lane.b32.xlu0 %v1866, 127
        %v1871 = vpop.permute.xlu0 %1870
        %1872 = vrot.lane.b32.xlu0 %v1867, 127
        %v1873 = vpop.permute.xlu0 %1872
        %1874 = vrot.lane.b32.xlu0 %v1868, 127
        %v1875 = vpop.permute.xlu0 %1874
        %1876 = vrot.lane.b32.xlu0 %v1869, 127
        %v1877 = vpop.permute.xlu0 %1876
        %v1878 = vsel %vm828, %v1871, %v1873
        %v1879 = vsel %vm828, %v1873, %v1875
        %v1880 = vsel %vm828, %v1875, %v1877
        %v1882 = vsel %vm278, %v1857, 0
        %v1885 = vsel %vm282, %v1878, 0
        %v1888 = vsel %vm282, %v1879, 0
        %v1891 = vsel %vm282, %v1880, 0
        %1893 = vmatprep.subr.bf16.mxu0 %v1888
        %1894 = vmatpush1.bf16.msra.mxu0 %v1885
        %1895 = vmatprep.subr.bf16.mxu0 0
        %1896 = vmatpush1.bf16.msra.mxu0 0
        %1897 = vmatprep.subr.bf16.mxu0 0
        %1898 = vmatpush1.bf16.msra.mxu0 0
        %1899 = vmatprep.subr.bf16.mxu0 0
        %1900 = vmatpush1.bf16.msra.mxu0 0
        %1901 = vmatprep.subr.bf16.mxu0 0
        %1902 = vmatpush1.bf16.msra.mxu0 0
        %1903 = vmatprep.subr.bf16.mxu0 0
        %1904 = vmatpush1.bf16.msra.mxu0 0
        %1905 = vmatprep.subr.bf16.mxu0 0
        %1906 = vmatpush1.bf16.msra.mxu0 0
        %1907 = vmatprep.subr.bf16.mxu0 0
        %1908 = vmatpush1.bf16.msra.mxu0 0
        %1909 = vmatprep.subr.bf16.mxu0 0
        %1910 = vmatpush1.bf16.msra.mxu0 0
        %1911 = vmatprep.subr.bf16.mxu0 0
        %1912 = vmatpush1.bf16.msra.mxu0 0
        %1913 = vmatprep.subr.bf16.mxu0 0
        %1914 = vmatpush1.bf16.msra.mxu0 0
        %1915 = vmatprep.subr.bf16.mxu0 0
        %1916 = vmatpush1.bf16.msra.mxu0 0
        %1917 = vmatprep.subr.bf16.mxu0 0
        %1918 = vmatpush1.bf16.msra.mxu0 0
        %1919 = vmatprep.subr.bf16.mxu0 0
        %1920 = vmatpush1.bf16.msra.mxu0 0
        %1921 = vmatprep.subr.bf16.mxu0 0
        %1922 = vmatpush1.bf16.msra.mxu0 0
        %1923 = vmatprep.subr.bf16.mxu0 0
        %1924 = vmatpush1.bf16.msra.mxu0 0
        %1925 = vmatprep.mubr.bf16.mxu0 0
        %1926 = vmatmul.mubr.bf16.gmra.mrb[0].mxu0 %v1882
        %v1927 = vpop.f32.mrb[0].mxu0
        %v1928 = vadd.f32 0.0, %v1927
        %v1929 = vpop.f32.mrb[0].mxu0
        %v1930 = vadd.f32 0.0, %v1929
        %v1931 = vpop.f32.mrb[0].mxu0
        %v1932 = vpop.f32.mrb[0].mxu0
        %1933 = vdwg.mxu0
        %1934 = vmatprep.subr.bf16.mxu0 0
        %1935 = vmatpush1.bf16.msra.mxu0 %v1891
        %1936 = vmatprep.subr.bf16.mxu0 0
        %1937 = vmatpush1.bf16.msra.mxu0 0
        %1938 = vmatprep.subr.bf16.mxu0 0
        %1939 = vmatpush1.bf16.msra.mxu0 0
        %1940 = vmatprep.subr.bf16.mxu0 0
        %1941 = vmatpush1.bf16.msra.mxu0 0
        %1942 = vmatprep.subr.bf16.mxu0 0
        %1943 = vmatpush1.bf16.msra.mxu0 0
        %1944 = vmatprep.subr.bf16.mxu0 0
        %1945 = vmatpush1.bf16.msra.mxu0 0
        %1946 = vmatprep.subr.bf16.mxu0 0
        %1947 = vmatpush1.bf16.msra.mxu0 0
        %1948 = vmatprep.subr.bf16.mxu0 0
        %1949 = vmatpush1.bf16.msra.mxu0 0
        %1950 = vmatprep.subr.bf16.mxu0 0
        %1951 = vmatpush1.bf16.msra.mxu0 0
        %1952 = vmatprep.subr.bf16.mxu0 0
        %1953 = vmatpush1.bf16.msra.mxu0 0
        %1954 = vmatprep.subr.bf16.mxu0 0
        %1955 = vmatpush1.bf16.msra.mxu0 0
        %1956 = vmatprep.subr.bf16.mxu0 0
        %1957 = vmatpush1.bf16.msra.mxu0 0
        %1958 = vmatprep.subr.bf16.mxu0 0
        %1959 = vmatpush1.bf16.msra.mxu0 0
        %1960 = vmatprep.subr.bf16.mxu0 0
        %1961 = vmatpush1.bf16.msra.mxu0 0
        %1962 = vmatprep.subr.bf16.mxu0 0
        %1963 = vmatpush1.bf16.msra.mxu0 0
        %1964 = vmatprep.subr.bf16.mxu0 0
        %1965 = vmatpush1.bf16.msra.mxu0 0
        %1966 = vmatprep.mubr.bf16.mxu0 0
        %1967 = vmatmul.mubr.bf16.gmra.mrb[0].mxu0 %v1882
        %v1968 = vpop.f32.mrb[0].mxu0
        %v1969 = vadd.f32 0.0, %v1968
        %v1970 = vpop.f32.mrb[0].mxu0
        %v1971 = vpop.f32.mrb[0].mxu0
        %v1972 = vpop.f32.mrb[0].mxu0
        %1973 = vdwg.mxu0
        %v1974 = vadd.f32 %v1853, %v1928
        %v1975 = vadd.f32 %v1854, %v1930
        %v1976 = vadd.f32 %v1855, %v1969
        %s1977 = scalar_lea.vmem %s4, 24
        %v1978 = vld [vmem:[%s1977] sm:$0xf]
        %1979 = vrot.lane.b32.xlu0 %v1866, 111
        %v1980 = vpop.permute.xlu0 %1979
        %1981 = vrot.lane.b32.xlu0 %v1867, 111
        %v1982 = vpop.permute.xlu0 %1981
        %1983 = vrot.lane.b32.xlu0 %v1868, 111
        %v1984 = vpop.permute.xlu0 %1983
        %1985 = vrot.lane.b32.xlu0 %v1869, 111
        %v1986 = vpop.permute.xlu0 %1985
        %v1987 = vsel %vm938, %v1980, %v1982
        %v1988 = vsel %vm938, %v1982, %v1984
        %v1989 = vsel %vm938, %v1984, %v1986
        %v1991 = vsel %vm278, %v1978, 0
        %v1994 = vsel %vm282, %v1987, 0
        %v1997 = vsel %vm282, %v1988, 0
        %v2000 = vsel %vm282, %v1989, 0
        %2002 = vmatprep.subr.bf16.mxu0 %v1997
        %2003 = vmatpush1.bf16.msra.mxu0 %v1994
        %2004 = vmatprep.subr.bf16.mxu0 0
        %2005 = vmatpush1.bf16.msra.mxu0 0
        %2006 = vmatprep.subr.bf16.mxu0 0
        %2007 = vmatpush1.bf16.msra.mxu0 0
        %2008 = vmatprep.subr.bf16.mxu0 0
        %2009 = vmatpush1.bf16.msra.mxu0 0
        %2010 = vmatprep.subr.bf16.mxu0 0
        %2011 = vmatpush1.bf16.msra.mxu0 0
        %2012 = vmatprep.subr.bf16.mxu0 0
        %2013 = vmatpush1.bf16.msra.mxu0 0
        %2014 = vmatprep.subr.bf16.mxu0 0
        %2015 = vmatpush1.bf16.msra.mxu0 0
        %2016 = vmatprep.subr.bf16.mxu0 0
        %2017 = vmatpush1.bf16.msra.mxu0 0
        %2018 = vmatprep.subr.bf16.mxu0 0
        %2019 = vmatpush1.bf16.msra.mxu0 0
        %2020 = vmatprep.subr.bf16.mxu0 0
        %2021 = vmatpush1.bf16.msra.mxu0 0
        %2022 = vmatprep.subr.bf16.mxu0 0
        %2023 = vmatpush1.bf16.msra.mxu0 0
        %2024 = vmatprep.subr.bf16.mxu0 0
        %2025 = vmatpush1.bf16.msra.mxu0 0
        %2026 = vmatprep.subr.bf16.mxu0 0
        %2027 = vmatpush1.bf16.msra.mxu0 0
        %2028 = vmatprep.subr.bf16.mxu0 0
        %2029 = vmatpush1.bf16.msra.mxu0 0
        %2030 = vmatprep.subr.bf16.mxu0 0
        %2031 = vmatpush1.bf16.msra.mxu0 0
        %2032 = vmatprep.subr.bf16.mxu0 0
        %2033 = vmatpush1.bf16.msra.mxu0 0
        %2034 = vmatprep.mubr.bf16.mxu0 0
        %2035 = vmatmul.mubr.bf16.gmra.mrb[0].mxu0 %v1991
        %v2036 = vpop.f32.mrb[0].mxu0
        %v2037 = vadd.f32 0.0, %v2036
        %v2038 = vpop.f32.mrb[0].mxu0
        %v2039 = vadd.f32 0.0, %v2038
        %v2040 = vpop.f32.mrb[0].mxu0
        %v2041 = vpop.f32.mrb[0].mxu0
        %2042 = vdwg.mxu0
        %2043 = vmatprep.subr.bf16.mxu0 0
        %2044 = vmatpush1.bf16.msra.mxu0 %v2000
        %2045 = vmatprep.subr.bf16.mxu0 0
        %2046 = vmatpush1.bf16.msra.mxu0 0
        %2047 = vmatprep.subr.bf16.mxu0 0
        %2048 = vmatpush1.bf16.msra.mxu0 0
        %2049 = vmatprep.subr.bf16.mxu0 0
        %2050 = vmatpush1.bf16.msra.mxu0 0
        %2051 = vmatprep.subr.bf16.mxu0 0
        %2052 = vmatpush1.bf16.msra.mxu0 0
        %2053 = vmatprep.subr.bf16.mxu0 0
        %2054 = vmatpush1.bf16.msra.mxu0 0
        %2055 = vmatprep.subr.bf16.mxu0 0
        %2056 = vmatpush1.bf16.msra.mxu0 0
        %2057 = vmatprep.subr.bf16.mxu0 0
        %2058 = vmatpush1.bf16.msra.mxu0 0
        %2059 = vmatprep.subr.bf16.mxu0 0
        %2060 = vmatpush1.bf16.msra.mxu0 0
        %2061 = vmatprep.subr.bf16.mxu0 0
        %2062 = vmatpush1.bf16.msra.mxu0 0
        %2063 = vmatprep.subr.bf16.mxu0 0
        %2064 = vmatpush1.bf16.msra.mxu0 0
        %2065 = vmatprep.subr.bf16.mxu0 0
        %2066 = vmatpush1.bf16.msra.mxu0 0
        %2067 = vmatprep.subr.bf16.mxu0 0
        %2068 = vmatpush1.bf16.msra.mxu0 0
        %2069 = vmatprep.subr.bf16.mxu0 0
        %2070 = vmatpush1.bf16.msra.mxu0 0
        %2071 = vmatprep.subr.bf16.mxu0 0
        %2072 = vmatpush1.bf16.msra.mxu0 0
        %2073 = vmatprep.subr.bf16.mxu0 0
        %2074 = vmatpush1.bf16.msra.mxu0 0
        %2075 = vmatprep.mubr.bf16.mxu0 0
        %2076 = vmatmul.mubr.bf16.gmra.mrb[0].mxu0 %v1991
        %v2077 = vpop.f32.mrb[0].mxu0
        %v2078 = vadd.f32 0.0, %v2077
        %v2079 = vpop.f32.mrb[0].mxu0
        %v2080 = vpop.f32.mrb[0].mxu0
        %v2081 = vpop.f32.mrb[0].mxu0
        %2082 = vdwg.mxu0
        %v2083 = vadd.f32 %v1974, %v2037
        %v2084 = vadd.f32 %v1975, %v2039
        %v2085 = vadd.f32 %v1976, %v2078
        %s2086 = scalar_lea.vmem %s4, 28
        %v2087 = vld [vmem:[%s2086] sm:$0xf]
        %2088 = vrot.lane.b32.xlu0 %v1866, 110
        %v2089 = vpop.permute.xlu0 %2088
        %2090 = vrot.lane.b32.xlu0 %v1867, 110
        %v2091 = vpop.permute.xlu0 %2090
        %2092 = vrot.lane.b32.xlu0 %v1868, 110
        %v2093 = vpop.permute.xlu0 %2092
        %2094 = vrot.lane.b32.xlu0 %v1869, 110
        %v2095 = vpop.permute.xlu0 %2094
        %v2096 = vsel %vm1048, %v2089, %v2091
        %v2097 = vsel %vm1048, %v2091, %v2093
        %v2098 = vsel %vm1048, %v2093, %v2095
        %v2100 = vsel %vm278, %v2087, 0
        %v2103 = vsel %vm282, %v2096, 0
        %v2106 = vsel %vm282, %v2097, 0
        %v2109 = vsel %vm282, %v2098, 0
        %2111 = vmatprep.subr.bf16.mxu0 %v2106
        %2112 = vmatpush1.bf16.msra.mxu0 %v2103
        %2113 = vmatprep.subr.bf16.mxu0 0
        %2114 = vmatpush1.bf16.msra.mxu0 0
        %2115 = vmatprep.subr.bf16.mxu0 0
        %2116 = vmatpush1.bf16.msra.mxu0 0
        %2117 = vmatprep.subr.bf16.mxu0 0
        %2118 = vmatpush1.bf16.msra.mxu0 0
        %2119 = vmatprep.subr.bf16.mxu0 0
        %2120 = vmatpush1.bf16.msra.mxu0 0
        %2121 = vmatprep.subr.bf16.mxu0 0
        %2122 = vmatpush1.bf16.msra.mxu0 0
        %2123 = vmatprep.subr.bf16.mxu0 0
        %2124 = vmatpush1.bf16.msra.mxu0 0
        %2125 = vmatprep.subr.bf16.mxu0 0
        %2126 = vmatpush1.bf16.msra.mxu0 0
        %2127 = vmatprep.subr.bf16.mxu0 0
        %2128 = vmatpush1.bf16.msra.mxu0 0
        %2129 = vmatprep.subr.bf16.mxu0 0
        %2130 = vmatpush1.bf16.msra.mxu0 0
        %2131 = vmatprep.subr.bf16.mxu0 0
        %2132 = vmatpush1.bf16.msra.mxu0 0
        %2133 = vmatprep.subr.bf16.mxu0 0
        %2134 = vmatpush1.bf16.msra.mxu0 0
        %2135 = vmatprep.subr.bf16.mxu0 0
        %2136 = vmatpush1.bf16.msra.mxu0 0
        %2137 = vmatprep.subr.bf16.mxu0 0
        %2138 = vmatpush1.bf16.msra.mxu0 0
        %2139 = vmatprep.subr.bf16.mxu0 0
        %2140 = vmatpush1.bf16.msra.mxu0 0
        %2141 = vmatprep.subr.bf16.mxu0 0
        %2142 = vmatpush1.bf16.msra.mxu0 0
        %2143 = vmatprep.mubr.bf16.mxu0 0
        %2144 = vmatmul.mubr.bf16.gmra.mrb[0].mxu0 %v2100
        %v2145 = vpop.f32.mrb[0].mxu0
        %v2146 = vadd.f32 0.0, %v2145
        %v2147 = vpop.f32.mrb[0].mxu0
        %v2148 = vadd.f32 0.0, %v2147
        %v2149 = vpop.f32.mrb[0].mxu0
        %v2150 = vpop.f32.mrb[0].mxu0
        %2151 = vdwg.mxu0
        %2152 = vmatprep.subr.bf16.mxu0 0
        %2153 = vmatpush1.bf16.msra.mxu0 %v2109
        %2154 = vmatprep.subr.bf16.mxu0 0
        %2155 = vmatpush1.bf16.msra.mxu0 0
        %2156 = vmatprep.subr.bf16.mxu0 0
        %2157 = vmatpush1.bf16.msra.mxu0 0
        %2158 = vmatprep.subr.bf16.mxu0 0
        %2159 = vmatpush1.bf16.msra.mxu0 0
        %2160 = vmatprep.subr.bf16.mxu0 0
        %2161 = vmatpush1.bf16.msra.mxu0 0
        %2162 = vmatprep.subr.bf16.mxu0 0
        %2163 = vmatpush1.bf16.msra.mxu0 0
        %2164 = vmatprep.subr.bf16.mxu0 0
        %2165 = vmatpush1.bf16.msra.mxu0 0
        %2166 = vmatprep.subr.bf16.mxu0 0
        %2167 = vmatpush1.bf16.msra.mxu0 0
        %2168 = vmatprep.subr.bf16.mxu0 0
        %2169 = vmatpush1.bf16.msra.mxu0 0
        %2170 = vmatprep.subr.bf16.mxu0 0
        %2171 = vmatpush1.bf16.msra.mxu0 0
        %2172 = vmatprep.subr.bf16.mxu0 0
        %2173 = vmatpush1.bf16.msra.mxu0 0
        %2174 = vmatprep.subr.bf16.mxu0 0
        %2175 = vmatpush1.bf16.msra.mxu0 0
        %2176 = vmatprep.subr.bf16.mxu0 0
        %2177 = vmatpush1.bf16.msra.mxu0 0
        %2178 = vmatprep.subr.bf16.mxu0 0
        %2179 = vmatpush1.bf16.msra.mxu0 0
        %2180 = vmatprep.subr.bf16.mxu0 0
        %2181 = vmatpush1.bf16.msra.mxu0 0
        %2182 = vmatprep.subr.bf16.mxu0 0
        %2183 = vmatpush1.bf16.msra.mxu0 0
        %2184 = vmatprep.mubr.bf16.mxu0 0
        %2185 = vmatmul.mubr.bf16.gmra.mrb[0].mxu0 %v2100
        %v2186 = vpop.f32.mrb[0].mxu0
        %v2187 = vadd.f32 0.0, %v2186
        %v2188 = vpop.f32.mrb[0].mxu0
        %v2189 = vpop.f32.mrb[0].mxu0
        %v2190 = vpop.f32.mrb[0].mxu0
        %2191 = vdwg.mxu0
        %v2192 = vadd.f32 %v2083, %v2146
        %v2193 = vadd.f32 %v2084, %v2148
        %v2194 = vadd.f32 %v2085, %v2187
        %s2195 = scalar_lea.vmem %s4, 32
        %v2196 = vld [vmem:[%s2195] sm:$0xf]
        %2197 = vrot.lane.b32.xlu0 %v1866, 109
        %v2198 = vpop.permute.xlu0 %2197
        %2199 = vrot.lane.b32.xlu0 %v1867, 109
        %v2200 = vpop.permute.xlu0 %2199
        %2201 = vrot.lane.b32.xlu0 %v1868, 109
        %v2202 = vpop.permute.xlu0 %2201
        %2203 = vrot.lane.b32.xlu0 %v1869, 109
        %v2204 = vpop.permute.xlu0 %2203
        %v2205 = vsel %vm1158, %v2198, %v2200
        %v2206 = vsel %vm1158, %v2200, %v2202
        %v2207 = vsel %vm1158, %v2202, %v2204
        %v2209 = vsel %vm278, %v2196, 0
        %v2212 = vsel %vm282, %v2205, 0
        %v2215 = vsel %vm282, %v2206, 0
        %v2218 = vsel %vm282, %v2207, 0
        %2220 = vmatprep.subr.bf16.mxu0 %v2215
        %2221 = vmatpush1.bf16.msra.mxu0 %v2212
        %2222 = vmatprep.subr.bf16.mxu0 0
        %2223 = vmatpush1.bf16.msra.mxu0 0
        %2224 = vmatprep.subr.bf16.mxu0 0
        %2225 = vmatpush1.bf16.msra.mxu0 0
        %2226 = vmatprep.subr.bf16.mxu0 0
        %2227 = vmatpush1.bf16.msra.mxu0 0
        %2228 = vmatprep.subr.bf16.mxu0 0
        %2229 = vmatpush1.bf16.msra.mxu0 0
        %2230 = vmatprep.subr.bf16.mxu0 0
        %2231 = vmatpush1.bf16.msra.mxu0 0
        %2232 = vmatprep.subr.bf16.mxu0 0
        %2233 = vmatpush1.bf16.msra.mxu0 0
        %2234 = vmatprep.subr.bf16.mxu0 0
        %2235 = vmatpush1.bf16.msra.mxu0 0
        %2236 = vmatprep.subr.bf16.mxu0 0
        %2237 = vmatpush1.bf16.msra.mxu0 0
        %2238 = vmatprep.subr.bf16.mxu0 0
        %2239 = vmatpush1.bf16.msra.mxu0 0
        %2240 = vmatprep.subr.bf16.mxu0 0
        %2241 = vmatpush1.bf16.msra.mxu0 0
        %2242 = vmatprep.subr.bf16.mxu0 0
        %2243 = vmatpush1.bf16.msra.mxu0 0
        %2244 = vmatprep.subr.bf16.mxu0 0
        %2245 = vmatpush1.bf16.msra.mxu0 0
        %2246 = vmatprep.subr.bf16.mxu0 0
        %2247 = vmatpush1.bf16.msra.mxu0 0
        %2248 = vmatprep.subr.bf16.mxu0 0
        %2249 = vmatpush1.bf16.msra.mxu0 0
        %2250 = vmatprep.subr.bf16.mxu0 0
        %2251 = vmatpush1.bf16.msra.mxu0 0
        %2252 = vmatprep.mubr.bf16.mxu0 0
        %2253 = vmatmul.mubr.bf16.gmra.mrb[0].mxu0 %v2209
        %v2254 = vpop.f32.mrb[0].mxu0
        %v2255 = vadd.f32 0.0, %v2254
        %v2256 = vpop.f32.mrb[0].mxu0
        %v2257 = vadd.f32 0.0, %v2256
        %v2258 = vpop.f32.mrb[0].mxu0
        %v2259 = vpop.f32.mrb[0].mxu0
        %2260 = vdwg.mxu0
        %2261 = vmatprep.subr.bf16.mxu0 0
        %2262 = vmatpush1.bf16.msra.mxu0 %v2218
        %2263 = vmatprep.subr.bf16.mxu0 0
        %2264 = vmatpush1.bf16.msra.mxu0 0
        %2265 = vmatprep.subr.bf16.mxu0 0
        %2266 = vmatpush1.bf16.msra.mxu0 0
        %2267 = vmatprep.subr.bf16.mxu0 0
        %2268 = vmatpush1.bf16.msra.mxu0 0
        %2269 = vmatprep.subr.bf16.mxu0 0
        %2270 = vmatpush1.bf16.msra.mxu0 0
        %2271 = vmatprep.subr.bf16.mxu0 0
        %2272 = vmatpush1.bf16.msra.mxu0 0
        %2273 = vmatprep.subr.bf16.mxu0 0
        %2274 = vmatpush1.bf16.msra.mxu0 0
        %2275 = vmatprep.subr.bf16.mxu0 0
        %2276 = vmatpush1.bf16.msra.mxu0 0
        %2277 = vmatprep.subr.bf16.mxu0 0
        %2278 = vmatpush1.bf16.msra.mxu0 0
        %2279 = vmatprep.subr.bf16.mxu0 0
        %2280 = vmatpush1.bf16.msra.mxu0 0
        %2281 = vmatprep.subr.bf16.mxu0 0
        %2282 = vmatpush1.bf16.msra.mxu0 0
        %2283 = vmatprep.subr.bf16.mxu0 0
        %2284 = vmatpush1.bf16.msra.mxu0 0
        %2285 = vmatprep.subr.bf16.mxu0 0
        %2286 = vmatpush1.bf16.msra.mxu0 0
        %2287 = vmatprep.subr.bf16.mxu0 0
        %2288 = vmatpush1.bf16.msra.mxu0 0
        %2289 = vmatprep.subr.bf16.mxu0 0
        %2290 = vmatpush1.bf16.msra.mxu0 0
        %2291 = vmatprep.subr.bf16.mxu0 0
        %2292 = vmatpush1.bf16.msra.mxu0 0
        %2293 = vmatprep.mubr.bf16.mxu0 0
        %2294 = vmatmul.mubr.bf16.gmra.mrb[0].mxu0 %v2209
        %v2295 = vpop.f32.mrb[0].mxu0
        %v2296 = vadd.f32 0.0, %v2295
        %v2297 = vpop.f32.mrb[0].mxu0
        %v2298 = vpop.f32.mrb[0].mxu0
        %v2299 = vpop.f32.mrb[0].mxu0
        %2300 = vdwg.mxu0
        %v2301 = vadd.f32 %v2192, %v2255
        %v2302 = vadd.f32 %v2193, %v2257
        %v2303 = vadd.f32 %v2194, %v2296
        %v2304 = vld [vmem:[%s5] sm:$0xff]
        %2306 = vset.pattern.permute.xlu0 0
        %2307 = vperm.xlu0 %2306, %v2304
        %v2308 = vpop.permute.xlu0 %2307
        %v2310 = vadd.f32 %v2301, %v2308
        %v2311 = vadd.f32 %v2302, %v2308
        %v2312 = vadd.f32 %v2303, %v2308
        %2313 = vst [vmem:[%s244] sm:$0xff] %v2310
        %2314 = vst [vmem:[%s244 + $0x8] sm:$0xff] %v2311
        %2315 = vst [vmem:[%s244 + $0x10] sm:$0xff] %v2312
        %s2316 = sand.u32 %s159, 1
        %s2317 = scalar_lea.sflag [#allocation4], %s2316
        %s2318 = sand.u32 %s159, 1
        %s2319 = smul.addr %s2318, 24
        %s2320 = scalar_lea.vmem [#allocation3], %s2319
        // Predicated region
        $region45: #{tpu_custom_call.1} parent=43 // pred_check
          %p2321 = pneg %p169
        $region46: #{tpu_custom_call.1} parent=43 // pred_check_branch
          %2323 = sbr.rel (%p2321) target = $region48
        $region47: #{tpu_custom_call.1} parent=43 // pred_region
          %s2325 = ssub.s32 384, 384
          %2326 = vsyncadd %s2317, %s2325
          %s2327 = smul.addr %s20, 3
          %s2328 = smul.addr %s2327, 128
          %s2329 = scalar_lea.hbm %s6, %s2328
          %s2331 = sshll.u32 %s2320, 4
          %s2332 = int_to_ptr.vmem [resolvable:$true] %s2331
          %2334 = dma.vmem_to_hbm [thread:$0]  %s2332, 384, %s2329, %s2317
        $region48: #{tpu_custom_call.1} parent=43 // pred_fallthru
          _
      $region44: #{tpu_custom_call.1} parent=5 // pred_fallthru
        _
      %p2335 = scmp.le.s32.totalorder 2, %s15
      // Predicated region
      $region49: #{tpu_custom_call.1} parent=5 // pred_check
        %p2336 = pneg %p2335
      $region50: #{tpu_custom_call.1} parent=5 // pred_check_branch
        %2338 = sbr.rel (%p2336) target = $region52
      $region51: #{tpu_custom_call.1} parent=5 // pred_region
        %s2339 = ssub.s32 %s15, 2
        // Predicated region
        $region53: #{tpu_custom_call.1} parent=51 // pred_check
          %p2340 = pneg %p175
        $region54: #{tpu_custom_call.1} parent=51 // pred_check_branch
          %2342 = sbr.rel (%p2340) target = $region56
        $region55: #{tpu_custom_call.1} parent=51 // pred_region
          %s2343 = sand.u32 %s160, 1
          %s2344 = scalar_lea.sflag [#allocation4], %s2343
          %s2345 = sand.u32 %s160, 1
          %s2346 = smul.addr %s2345, 24
          %s2347 = scalar_lea.vmem [#allocation3], %s2346
          %2348 = dma.done %s2344, 384
        $region56: #{tpu_custom_call.1} parent=51 // pred_fallthru
          _
      $region52: #{tpu_custom_call.1} parent=5 // pred_fallthru
        _
    $region6: #{tpu_custom_call.1} parent=1 // loop_footer
      %s19 = sadd.s32 1, %s15
    $region7: #{tpu_custom_call.1} parent=1 // loop_footer_branch
      %14 = sbr.rel target = $region3
    $region8: #{tpu_custom_call.1} parent=1 // loop_exit
      _
    %2349 = vsyncpa [#allocation4], 1
    %s2350 = scalar_lea.sflag [#allocation4], 1
    %2351 = vsyncpa %s2350, 1

</llo_original>
